<compile_context>
chip_gen: v7x
topology: tpu7x:2x2x1
jax: 0.10.0
libtpu: 0.0.40
codegen_flags: <defaults>
</compile_context>

<pallas_src>
import jax
import jax.numpy as jnp
from jax.experimental import pallas as pl
from jax.experimental.pallas import tpu as pltpu

_LANE = 128
_SUBLANE = 8


def _round_up(x, m):
    return ((x + m - 1) // m) * m


def _cdiv(a, b):
    return -(-a // b)


def _pad2(a, rows, cols):
    return jnp.pad(a, ((0, rows - a.shape[0]), (0, cols - a.shape[1])))


def pack_params(layers, input_size, hidden_dim, output_size):
    """Pack all weights/biases into one lane/sublane-padded bf16 buffer.

    Row layout (every segment starts at an 8-row-aligned offset, columns
    padded to PW = max(HP, OP); padded rows/cols are zero so padded matmuls
    stay exact):
        W_in  : IP rows  (row `input_size` holds b_in -- folded bias, matched
                          by a constant-1 lane appended to x)
        per hidden layer k:  W_h[k]: HP rows, b_h[k]: 8 rows (row 0 used)
        W_out : HP rows      b_out : 8 rows (row 0 used)
    """
    IP = _round_up(input_size + 1, _LANE)   # +1 lane for the folded input bias
    HP = _round_up(hidden_dim, _LANE)
    OP = _round_up(output_size, _LANE)
    PW = max(HP, OP)

    segs = []
    offs = {"w_h": [], "b_h": []}
    row = 0

    def add(arr, rows):
        nonlocal row
        segs.append(_pad2(arr.astype(jnp.float32), rows, PW))
        start = row
        row += rows
        return start

    w_in, b_in = layers[0]
    w_in_aug = jnp.concatenate(
        [w_in.astype(jnp.float32), b_in.reshape(1, -1).astype(jnp.float32)],
        axis=0,
    )
    offs["w_in"] = add(w_in_aug, IP)
    for (w, b) in layers[1:-1]:
        offs["w_h"].append(add(w, HP))
        offs["b_h"].append(add(b.reshape(1, -1), _SUBLANE))
    w_out, b_out = layers[-1]
    offs["w_out"] = add(w_out, HP)
    offs["b_out"] = add(b_out.reshape(1, -1), _SUBLANE)

    # bf16: MXU-native on all generations, half the DMA bytes / VMEM.
    packed = jnp.concatenate(segs, axis=0).astype(jnp.bfloat16)
    return packed, offs, (IP, HP, OP, PW)


def _choose_batch_tile(batch, batch_tile, IP, HP, OP):
    # Sublane-align the requested tile (fixes the (8,128) constraint hole).
    batch_tile = max(_SUBLANE, _round_up(int(batch_tile), _SUBLANE))

    # Cap the tile so double-buffered x/out tiles plus live f32 activations
    # fit a conservative budget (~12 MiB) alongside the resident params --
    # safe even under v5e's 16 MiB default scoped VMEM.
    per_row_bytes = 2 * IP * 2 + 2 * OP * 4 + 2 * HP * 4
    max_tb = max(_SUBLANE, ((12 << 20) // per_row_bytes) // _SUBLANE * _SUBLANE)
    batch_tile = min(batch_tile, max_tb)

    B8 = _round_up(batch, _SUBLANE)
    num_tiles = _cdiv(B8, batch_tile)
    # v7x has two TensorCores: give dimension_semantics=("parallel",) at
    # least two tiles whenever there is enough batch (no-op on v5e/v6e).
    if B8 >= 2 * _SUBLANE:
        num_tiles = max(num_tiles, 2)
    # Balanced tiles minimize batch padding (<~ one tile of waste total).
    TB = _round_up(_cdiv(B8, num_tiles), _SUBLANE)
    if TB >= 2 * _SUBLANE:
        # Multiple of 16 so each tile splits into two 8-aligned chunks
        # (intra-tile MXU/EUP overlap).
        TB = _round_up(TB, 2 * _SUBLANE)
    B_pad = TB * num_tiles
    return TB, B_pad


def model_nn_forward(x, layers, *, batch_tile=512):
    """model_NN forward pass as a single batch-tiled Pallas kernel.

    x: [batch, input_size] float32
    layers: list of (W, b) pairs:
        [(in,hid),(1,hid)] , (n_layers-1) x [(hid,hid),(1,hid)] , [(hid,out),(1,out)]
    returns: [batch, output_size] float32
    """
    batch, input_size = x.shape
    hidden_dim = layers[0][0].shape[1]
    output_size = layers[-1][0].shape[1]
    n_hidden = len(layers) - 2  # number of hid->hid layers (= n_layers - 1)

    packed, offs, (IP, HP, OP, PW) = pack_params(
        layers, input_size, hidden_dim, output_size
    )
    # TODO(synk): if packed params ever exceed ~60% of per-gen VMEM (very
    # large hidden_dim * n_layers), a per-layer weight-streaming path (second
    # grid axis / pltpu.emit_pipeline) would be needed; all-resident covers
    # realistic rcognita model sizes.

    TB, B_pad = _choose_batch_tile(batch, batch_tile, IP, HP, OP)
    n_chunks = 2 if TB % (2 * _SUBLANE) == 0 else 1
    CS = TB // n_chunks

    # Pad batch/features; lane `input_size` is set to 1.0 so b_in (stored as
    # row `input_size` of W_in) is applied by the MXU matmul itself.
    x_p = jnp.pad(
        x.astype(jnp.float32), ((0, B_pad - batch), (0, IP - input_size))
    )
    x_p = x_p.at[:, input_size].set(1.0).astype(jnp.bfloat16)

    def kernel(x_ref, p_ref, o_ref):
        # Input layer (bias folded into W_in via the constant-1 lane).
        w_in = p_ref[offs["w_in"]:offs["w_in"] + IP, 0:HP]
        hs = []
        for c in range(n_chunks):
            xv = x_ref[c * CS:(c + 1) * CS, :]
            hs.append(
                jnp.tanh(jnp.dot(xv, w_in, preferred_element_type=jnp.float32))
            )

        # Hidden layers: bf16 MXU matmuls with f32 accumulation; bias-add and
        # tanh in f32 (no bf16 VPU/EUP on v5e).  The two independent chunks
        # let one chunk's matmul overlap the other's tanh.
        for k in range(n_hidden):
            wo = offs["w_h"][k]
            bo = offs["b_h"][k]
            w = p_ref[wo:wo + HP, 0:HP]
            b = p_ref[bo:bo + 1, 0:HP].astype(jnp.float32)
            hs = [
                jnp.tanh(
                    jnp.dot(h.astype(jnp.bfloat16), w,
                            preferred_element_type=jnp.float32) + b
                )
                for h in hs
            ]

        # Output layer: linear, lane-dense f32 store (OP multiple of 128).
        wo = offs["w_out"]
        bo = offs["b_out"]
        w = p_ref[wo:wo + HP, 0:OP]
        b = p_ref[bo:bo + 1, 0:OP].astype(jnp.float32)
        for c in range(n_chunks):
            o_ref[c * CS:(c + 1) * CS, :] = (
                jnp.dot(hs[c].astype(jnp.bfloat16), w,
                        preferred_element_type=jnp.float32) + b
            )

    # Explicit VMEM budget: single-buffered bf16 params + double-buffered
    # x/out tiles + live f32 activations, with 2x slack, clamped to sane
    # per-generation limits (min 16 MiB, max 56 MiB < v7x's 64 MiB physical).
    param_bytes = packed.size * 2
    tile_bytes = 2 * TB * IP * 2 + 2 * TB * OP * 4
    act_bytes = 2 * TB * HP * 4
    vmem_limit = int(
        min(max(2 * (param_bytes + tile_bytes + act_bytes) + (4 << 20),
                16 << 20),
            56 << 20)
    )

    flops = 2 * B_pad * (IP * HP + n_hidden * HP * HP + HP * OP)
    transcendentals = B_pad * HP * (1 + n_hidden)
    bytes_accessed = 2 * x_p.size + 2 * packed.size + 4 * B_pad * OP

    def build_call(single_buffer_params):
        param_kwargs = {}
        if single_buffer_params:
            # Constant index map -> block never changes; single-buffering the
            # params halves their VMEM reservation.
            param_kwargs["pipeline_mode"] = pl.Buffered(buffer_count=1)
        return pl.pallas_call(
            kernel,
            out_shape=jax.ShapeDtypeStruct((B_pad, OP), jnp.float32),
            grid=(B_pad // TB,),
            in_specs=[
                pl.BlockSpec((TB, IP), lambda i: (i, 0)),
                pl.BlockSpec(packed.shape, lambda i: (0, 0), **param_kwargs),
            ],
            out_specs=pl.BlockSpec((TB, OP), lambda i: (i, 0)),
            compiler_params=pltpu.CompilerParams(
                dimension_semantics=("parallel",),  # v7x: 2 TCs split batch
                vmem_limit_bytes=vmem_limit,
            ),
            cost_estimate=pl.CostEstimate(
                flops=flops,
                transcendentals=transcendentals,
                bytes_accessed=bytes_accessed,
            ),
        )

    try:
        out = build_call(True)(x_p, packed)
    except Exception:
        # Fallback if this JAX version rejects Buffered(1) on a pallas_call
        # BlockSpec; identical math, just default double-buffered params.
        out = build_call(False)(x_p, packed)

    # Slice padded batch rows / padded output lanes back to the true shape.
    # (If the consumer tolerates padded lanes, return `out` directly to skip
    #  this extra HBM copy.)
    return out[:batch, :output_size]


def init_params(key, input_size, output_size, hidden_dim, n_layers):
    """PyTorch-Linear-like uniform init. Returns a list of (W, b) per layer."""
    dims = [input_size] + [hidden_dim] * n_layers + [output_size]
    keys = jax.random.split(key, 2 * (len(dims) - 1))

    def unif(k, shape, fan_in):
        bound = 1.0 / float(fan_in) ** 0.5
        return jax.random.uniform(
            k, shape, dtype=jnp.float32, minval=-bound, maxval=bound
        )

    layers = []
    for i in range(len(dims) - 1):
        fan_in, fan_out = dims[i], dims[i + 1]
        w = unif(keys[2 * i], (fan_in, fan_out), fan_in)
        b = unif(keys[2 * i + 1], (1, fan_out), fan_in)
        layers.append((w, b))
    return layers


def reference_forward(x, layers):
    h = x
    for (w, b) in layers[:-1]:
        h = jnp.tanh(h @ w + b)
    w, b = layers[-1]
    return h @ w + b


if __name__ == "__main__":
    input_size = 16
    output_size = 4
    hidden_dim = 32
    n_layers = 2
    batch = 40  # exercises multi-tile grid, intra-tile chunking, and padding

    key = jax.random.PRNGKey(0)
    k_x, k_p = jax.random.split(key)

    x = jax.random.normal(k_x, (batch, input_size), dtype=jnp.float32)
    layers = init_params(k_p, input_size, output_size, hidden_dim, n_layers)

    out = jax.block_until_ready(model_nn_forward(x, layers))
    ref = reference_forward(x, layers)

    assert out.shape == (batch, output_size)
    # bf16 weights/activations on the MXU -> loosened tolerance vs f32 ref.
    assert jnp.allclose(out, ref, atol=5e-2, rtol=5e-2), float(
        jnp.max(jnp.abs(out - ref))
    )

    print("KERNEL_OK")
</pallas_src>

<mosaic_0001>
module attributes {stable_mosaic.version = 11 : i64} {
  func.func @kernel(%arg0: i32, %arg1: memref<32x128xbf16, #tpu.memory_space<vmem>>, %arg2: memref<400x128xbf16, #tpu.memory_space<vmem>>, %arg3: memref<32x128xf32, #tpu.memory_space<vmem>>) attributes {dimension_semantics = [#tpu.dimension_semantics<parallel>], iteration_bounds = array<i64: 2>, scalar_prefetch = 0 : i64, scratch_operands = 0 : i64, tpu.core_type = #tpu.core_type<tc>, window_params = [{transform_indices = @transform_0, window_bounds = array<i64: 32, 128>}, {pipeline_mode = #tpu.pipeline_mode<synchronous>, transform_indices = @transform_1, window_bounds = array<i64: 400, 128>}, {transform_indices = @transform_2, window_bounds = array<i64: 32, 128>}]} {
    %c0 = arith.constant 0 : index
    %c0_0 = arith.constant 0 : index
    %0 = vector.load %arg2[%c0, %c0_0] : memref<400x128xbf16, #tpu.memory_space<vmem>>, vector<128x128xbf16>
    %c0_1 = arith.constant 0 : index
    %c0_2 = arith.constant 0 : index
    %1 = vector.load %arg1[%c0_1, %c0_2] : memref<32x128xbf16, #tpu.memory_space<vmem>>, vector<16x128xbf16>
    %cst = arith.constant dense<0.000000e+00> : vector<16x128xf32>
    %2 = tpu.matmul %1, %0, %cst {dimension_numbers = #tpu.dot_dimension_numbers<[1], [0], [0], [1], [0, 0, 1, 1], [], []>} : vector<16x128xbf16>, vector<128x128xbf16>, vector<16x128xf32> -> vector<16x128xf32>
    %3 = math.tanh %2 : vector<16x128xf32>
    %c16 = arith.constant 16 : index
    %c0_3 = arith.constant 0 : index
    %4 = vector.load %arg1[%c16, %c0_3] : memref<32x128xbf16, #tpu.memory_space<vmem>>, vector<16x128xbf16>
    %cst_4 = arith.constant dense<0.000000e+00> : vector<16x128xf32>
    %5 = tpu.matmul %4, %0, %cst_4 {dimension_numbers = #tpu.dot_dimension_numbers<[1], [0], [0], [1], [0, 0, 1, 1], [], []>} : vector<16x128xbf16>, vector<128x128xbf16>, vector<16x128xf32> -> vector<16x128xf32>
    %6 = math.tanh %5 : vector<16x128xf32>
    %c128 = arith.constant 128 : index
    %c0_5 = arith.constant 0 : index
    %7 = vector.load %arg2[%c128, %c0_5] : memref<400x128xbf16, #tpu.memory_space<vmem>>, vector<128x128xbf16>
    %c256 = arith.constant 256 : index
    %c0_6 = arith.constant 0 : index
    %8 = vector.load %arg2[%c256, %c0_6] : memref<400x128xbf16, #tpu.memory_space<vmem>>, vector<1x128xbf16>
    %9 = arith.extf %8 : vector<1x128xbf16> to vector<1x128xf32>
    %10 = arith.truncf %3 : vector<16x128xf32> to vector<16x128xbf16>
    %cst_7 = arith.constant dense<0.000000e+00> : vector<16x128xf32>
    %11 = tpu.matmul %10, %7, %cst_7 {dimension_numbers = #tpu.dot_dimension_numbers<[1], [0], [0], [1], [0, 0, 1, 1], [], []>} : vector<16x128xbf16>, vector<128x128xbf16>, vector<16x128xf32> -> vector<16x128xf32>
    %12 = vector.broadcast %9 : vector<1x128xf32> to vector<16x128xf32>
    %13 = arith.addf %11, %12 : vector<16x128xf32>
    %14 = math.tanh %13 : vector<16x128xf32>
    %15 = arith.truncf %6 : vector<16x128xf32> to vector<16x128xbf16>
    %cst_8 = arith.constant dense<0.000000e+00> : vector<16x128xf32>
    %16 = tpu.matmul %15, %7, %cst_8 {dimension_numbers = #tpu.dot_dimension_numbers<[1], [0], [0], [1], [0, 0, 1, 1], [], []>} : vector<16x128xbf16>, vector<128x128xbf16>, vector<16x128xf32> -> vector<16x128xf32>
    %17 = vector.broadcast %9 : vector<1x128xf32> to vector<16x128xf32>
    %18 = arith.addf %16, %17 : vector<16x128xf32>
    %19 = math.tanh %18 : vector<16x128xf32>
    %c264 = arith.constant 264 : index
    %c0_9 = arith.constant 0 : index
    %20 = vector.load %arg2[%c264, %c0_9] : memref<400x128xbf16, #tpu.memory_space<vmem>>, vector<128x128xbf16>
    %c392 = arith.constant 392 : index
    %c0_10 = arith.constant 0 : index
    %21 = vector.load %arg2[%c392, %c0_10] : memref<400x128xbf16, #tpu.memory_space<vmem>>, vector<1x128xbf16>
    %22 = arith.extf %21 : vector<1x128xbf16> to vector<1x128xf32>
    %23 = arith.truncf %14 : vector<16x128xf32> to vector<16x128xbf16>
    %cst_11 = arith.constant dense<0.000000e+00> : vector<16x128xf32>
    %24 = tpu.matmul %23, %20, %cst_11 {dimension_numbers = #tpu.dot_dimension_numbers<[1], [0], [0], [1], [0, 0, 1, 1], [], []>} : vector<16x128xbf16>, vector<128x128xbf16>, vector<16x128xf32> -> vector<16x128xf32>
    %25 = vector.broadcast %22 : vector<1x128xf32> to vector<16x128xf32>
    %26 = arith.addf %24, %25 : vector<16x128xf32>
    %c0_12 = arith.constant 0 : index
    %c0_13 = arith.constant 0 : index
    %27 = vector.load %arg3[%c0_12, %c0_13] : memref<32x128xf32, #tpu.memory_space<vmem>>, vector<16x128xf32>
    tpu.vector_store %arg3[%c0_12, %c0_13], %26 {strides = array<i32>} : memref<32x128xf32, #tpu.memory_space<vmem>>, vector<16x128xf32>,
    %28 = arith.truncf %19 : vector<16x128xf32> to vector<16x128xbf16>
    %cst_14 = arith.constant dense<0.000000e+00> : vector<16x128xf32>
    %29 = tpu.matmul %28, %20, %cst_14 {dimension_numbers = #tpu.dot_dimension_numbers<[1], [0], [0], [1], [0, 0, 1, 1], [], []>} : vector<16x128xbf16>, vector<128x128xbf16>, vector<16x128xf32> -> vector<16x128xf32>
    %30 = vector.broadcast %22 : vector<1x128xf32> to vector<16x128xf32>
    %31 = arith.addf %29, %30 : vector<16x128xf32>
    %c16_15 = arith.constant 16 : index
    %c0_16 = arith.constant 0 : index
    %32 = vector.load %arg3[%c16_15, %c0_16] : memref<32x128xf32, #tpu.memory_space<vmem>>, vector<16x128xf32>
    tpu.vector_store %arg3[%c16_15, %c0_16], %31 {strides = array<i32>} : memref<32x128xf32, #tpu.memory_space<vmem>>, vector<16x128xf32>,
    return
  }
  func.func @transform_0(%arg0: i32) -> (i32, i32) {
    %c0_i32 = arith.constant 0 : i32
    %c0_i32_0 = arith.constant 0 : i32
    return %arg0, %c0_i32 : i32, i32
  }
  func.func @transform_1(%arg0: i32) -> (i32, i32) {
    %c0_i32 = arith.constant 0 : i32
    %c0_i32_0 = arith.constant 0 : i32
    %c0_i32_1 = arith.constant 0 : i32
    return %c0_i32, %c0_i32_0 : i32, i32
  }
  func.func @transform_2(%arg0: i32) -> (i32, i32) {
    %c0_i32 = arith.constant 0 : i32
    %c0_i32_0 = arith.constant 0 : i32
    return %arg0, %c0_i32 : i32, i32
  }
}

module attributes {stable_mosaic.version = 11 : i64} {
  func.func @kernel(%arg0: i32, %arg1: memref<32x128xbf16, #tpu.memory_space<vmem>>, %arg2: memref<400x128xbf16, #tpu.memory_space<vmem>>, %arg3: memref<32x128xf32, #tpu.memory_space<vmem>>) attributes {dimension_semantics = [#tpu.dimension_semantics<parallel>], iteration_bounds = array<i64: 2>, scalar_prefetch = 0 : i64, scratch_operands = 0 : i64, tpu.core_type = #tpu.core_type<tc>, window_params = [{transform_indices = @transform_0, window_bounds = array<i64: 32, 128>}, {pipeline_mode = #tpu.pipeline_mode<synchronous>, transform_indices = @transform_1, window_bounds = array<i64: 400, 128>}, {transform_indices = @transform_2, window_bounds = array<i64: 32, 128>}]} {
    %c0 = arith.constant 0 : index
    %c0_0 = arith.constant 0 : index
    %0 = vector.load %arg2[%c0, %c0_0] : memref<400x128xbf16, #tpu.memory_space<vmem>>, vector<128x128xbf16>
    %c0_1 = arith.constant 0 : index
    %c0_2 = arith.constant 0 : index
    %1 = vector.load %arg1[%c0_1, %c0_2] : memref<32x128xbf16, #tpu.memory_space<vmem>>, vector<16x128xbf16>
    %cst = arith.constant dense<0.000000e+00> : vector<16x128xf32>
    %2 = tpu.matmul %1, %0, %cst {dimension_numbers = #tpu.dot_dimension_numbers<[1], [0], [0], [1], [0, 0, 1, 1], [], []>} : vector<16x128xbf16>, vector<128x128xbf16>, vector<16x128xf32> -> vector<16x128xf32>
    %3 = math.tanh %2 : vector<16x128xf32>
    %c16 = arith.constant 16 : index
    %c0_3 = arith.constant 0 : index
    %4 = vector.load %arg1[%c16, %c0_3] : memref<32x128xbf16, #tpu.memory_space<vmem>>, vector<16x128xbf16>
    %cst_4 = arith.constant dense<0.000000e+00> : vector<16x128xf32>
    %5 = tpu.matmul %4, %0, %cst_4 {dimension_numbers = #tpu.dot_dimension_numbers<[1], [0], [0], [1], [0, 0, 1, 1], [], []>} : vector<16x128xbf16>, vector<128x128xbf16>, vector<16x128xf32> -> vector<16x128xf32>
    %6 = math.tanh %5 : vector<16x128xf32>
    %c128 = arith.constant 128 : index
    %c0_5 = arith.constant 0 : index
    %7 = vector.load %arg2[%c128, %c0_5] : memref<400x128xbf16, #tpu.memory_space<vmem>>, vector<128x128xbf16>
    %c256 = arith.constant 256 : index
    %c0_6 = arith.constant 0 : index
    %8 = vector.load %arg2[%c256, %c0_6] : memref<400x128xbf16, #tpu.memory_space<vmem>>, vector<1x128xbf16>
    %9 = arith.extf %8 : vector<1x128xbf16> to vector<1x128xf32>
    %10 = arith.truncf %3 : vector<16x128xf32> to vector<16x128xbf16>
    %cst_7 = arith.constant dense<0.000000e+00> : vector<16x128xf32>
    %11 = tpu.matmul %10, %7, %cst_7 {dimension_numbers = #tpu.dot_dimension_numbers<[1], [0], [0], [1], [0, 0, 1, 1], [], []>} : vector<16x128xbf16>, vector<128x128xbf16>, vector<16x128xf32> -> vector<16x128xf32>
    %12 = vector.broadcast %9 : vector<1x128xf32> to vector<16x128xf32>
    %13 = arith.addf %11, %12 : vector<16x128xf32>
    %14 = math.tanh %13 : vector<16x128xf32>
    %15 = arith.truncf %6 : vector<16x128xf32> to vector<16x128xbf16>
    %cst_8 = arith.constant dense<0.000000e+00> : vector<16x128xf32>
    %16 = tpu.matmul %15, %7, %cst_8 {dimension_numbers = #tpu.dot_dimension_numbers<[1], [0], [0], [1], [0, 0, 1, 1], [], []>} : vector<16x128xbf16>, vector<128x128xbf16>, vector<16x128xf32> -> vector<16x128xf32>
    %17 = vector.broadcast %9 : vector<1x128xf32> to vector<16x128xf32>
    %18 = arith.addf %16, %17 : vector<16x128xf32>
    %19 = math.tanh %18 : vector<16x128xf32>
    %c264 = arith.constant 264 : index
    %c0_9 = arith.constant 0 : index
    %20 = vector.load %arg2[%c264, %c0_9] : memref<400x128xbf16, #tpu.memory_space<vmem>>, vector<128x128xbf16>
    %c392 = arith.constant 392 : index
    %c0_10 = arith.constant 0 : index
    %21 = vector.load %arg2[%c392, %c0_10] : memref<400x128xbf16, #tpu.memory_space<vmem>>, vector<1x128xbf16>
    %22 = arith.extf %21 : vector<1x128xbf16> to vector<1x128xf32>
    %23 = arith.truncf %14 : vector<16x128xf32> to vector<16x128xbf16>
    %cst_11 = arith.constant dense<0.000000e+00> : vector<16x128xf32>
    %24 = tpu.matmul %23, %20, %cst_11 {dimension_numbers = #tpu.dot_dimension_numbers<[1], [0], [0], [1], [0, 0, 1, 1], [], []>} : vector<16x128xbf16>, vector<128x128xbf16>, vector<16x128xf32> -> vector<16x128xf32>
    %25 = vector.broadcast %22 : vector<1x128xf32> to vector<16x128xf32>
    %26 = arith.addf %24, %25 : vector<16x128xf32>
    %c0_12 = arith.constant 0 : index
    %c0_13 = arith.constant 0 : index
    %27 = vector.load %arg3[%c0_12, %c0_13] : memref<32x128xf32, #tpu.memory_space<vmem>>, vector<16x128xf32>
    tpu.vector_store %arg3[%c0_12, %c0_13], %26 {strides = array<i32>} : memref<32x128xf32, #tpu.memory_space<vmem>>, vector<16x128xf32>,
    %28 = arith.truncf %19 : vector<16x128xf32> to vector<16x128xbf16>
    %cst_14 = arith.constant dense<0.000000e+00> : vector<16x128xf32>
    %29 = tpu.matmul %28, %20, %cst_14 {dimension_numbers = #tpu.dot_dimension_numbers<[1], [0], [0], [1], [0, 0, 1, 1], [], []>} : vector<16x128xbf16>, vector<128x128xbf16>, vector<16x128xf32> -> vector<16x128xf32>
    %30 = vector.broadcast %22 : vector<1x128xf32> to vector<16x128xf32>
    %31 = arith.addf %29, %30 : vector<16x128xf32>
    %c16_15 = arith.constant 16 : index
    %c0_16 = arith.constant 0 : index
    %32 = vector.load %arg3[%c16_15, %c0_16] : memref<32x128xf32, #tpu.memory_space<vmem>>, vector<16x128xf32>
    tpu.vector_store %arg3[%c16_15, %c0_16], %31 {strides = array<i32>} : memref<32x128xf32, #tpu.memory_space<vmem>>, vector<16x128xf32>,
    return
  }
  func.func @transform_0(%arg0: i32) -> (i32, i32) {
    %c0_i32 = arith.constant 0 : i32
    %c0_i32_0 = arith.constant 0 : i32
    return %arg0, %c0_i32 : i32, i32
  }
  func.func @transform_1(%arg0: i32) -> (i32, i32) {
    %c0_i32 = arith.constant 0 : i32
    %c0_i32_0 = arith.constant 0 : i32
    %c0_i32_1 = arith.constant 0 : i32
    return %c0_i32, %c0_i32_0 : i32, i32
  }
  func.func @transform_2(%arg0: i32) -> (i32, i32) {
    %c0_i32 = arith.constant 0 : i32
    %c0_i32_0 = arith.constant 0 : i32
    return %arg0, %c0_i32 : i32, i32
  }
}

</mosaic_0001>

<llo_original>
// kernel: tpu_custom_call.1
$region0: #{tpu_custom_call.1}
  #allocation0 [shape = 'u32[]', space=smem, size = 0x4, offset = 0x4, fixed_abs, tag = 'smem constant byte address 0x4 - core index']
  #allocation1 [shape = 'u32[144,128]{1,0:T(1,128)}', space=vmem, size = 0x12000, scoped, tag = 'internal scratch']
  %s0 = inlined_call_operand.hbm [shape: bf16[64,128], index: 0, kind: input, shape index: {}]
  %s1 = inlined_call_operand.hbm [shape: bf16[400,128], index: 1, kind: input, shape index: {}]
  %s2 = inlined_call_operand.hbm [shape: f32[64,128], index: 2, kind: output, shape index: {}]
  %s3 = sld [smem:[#allocation0]]
  $region49: #{tpu_custom_call.1} parent=0
    _
  %s5 = ssub.s32 1, %s3
  %s6 = scalar_select 0, %s5, %s3
  $region1: #{tpu_custom_call.1} parent=0
    #allocation2 [shape = 'u8[16384]{0}', space=vmem, size = 0x4000, scoped, tag = 'input window, operand 0']
    #allocation3 [shape = 's32[2]{0}', space=sflag, size = 0x8, scoped, tag = 'scoped memory for tpu_custom_call.1']
    #allocation4 [shape = 's32[2]{0}', space=sflag, size = 0x8, scoped, tag = 'scoped memory for tpu_custom_call.1']
    #allocation5 [shape = 'u8[102400]{0}', space=vmem, size = 0x19000, scoped, tag = 'input window, operand 1, single buffered']
    #allocation6 [shape = 's32[1]{0}', space=sflag, size = 0x4, scoped, tag = 'scoped memory for tpu_custom_call.1']
    #allocation7 [shape = 'u8[32768]{0}', space=vmem, size = 0x8000, scoped, tag = 'output window, operand 0']
    %7 = vsyncpa [#allocation3], 0
    %s8 = scalar_lea.sflag [#allocation3], 1
    %9 = vsyncpa %s8, 0
    %10 = vsyncpa [#allocation6], 0
    %11 = vsyncpa [#allocation4], 0
    %s12 = scalar_lea.sflag [#allocation4], 1
    %13 = vsyncpa %s12, 0
    loop: start=0, step=1, limit=4
    $region2: #{tpu_custom_call.1} parent=1 // loop_pre_header
      _
    $region3: #{tpu_custom_call.1} parent=1 // loop_header
      %s15 = sphi 0, %s19
      %p16 = scmp.ge.s32.totalorder %s15, 4
      %s25 = sphi 0, %s27
      %s28 = sphi 0, %s25
      %s29 = sphi 0, %s28
      %s45 = sphi 0, %s29
      %s49 = sphi 0, %s49
      %s51 = sphi 0, %s49
      %s52 = sphi 0, %s51
      %s66 = sphi 0, %s52
      %s72 = sphi 0, %s74
      %s75 = sphi 0, %s72
      %s76 = sphi 0, %s75
      %s92 = sphi 0, %s76
    $region4: #{tpu_custom_call.1} parent=1 // loop_header_branch
      %18 = sbr.rel (%p16) target = $region8
    $region5: #{tpu_custom_call.1} parent=1 // loop_body
      %s20 = ssub.s32 %s15, 1
      %s21 = ssub.s32 %s15, 2
      %s22 = sadd.s32 %s15, 1
      %s23 = ssub.s32 %s15, %s22
      %p24 = scmp.eq.s32.totalorder %s23, 0
      %s26 = sadd.s32 %s25, 1
      %s27 = scalar_select %p24, %s25, %s26
      %p30 = pneg %p24
      %p31 = scmp.eq.s32.totalorder %s15, 1
      %p32 = por %p30, %p31
      %p33 = scmp.ne.s32.totalorder %s25, %s28
      %p34 = scmp.eq.s32.totalorder %s15, 0
      %p35 = por %p33, %p34
      %p36 = scmp.ne.s32.totalorder %s25, %s28
      %p37 = scmp.eq.s32.totalorder %s20, 1
      %p38 = por %p36, %p37
      %p39 = scmp.ne.s32.totalorder %s28, %s29
      %p40 = scmp.eq.s32.totalorder %s20, 0
      %p41 = por %p39, %p40
      %p42 = scmp.ne.s32.totalorder %s28, %s29
      %p43 = scmp.eq.s32.totalorder %s21, 1
      %p44 = por %p42, %p43
      %p46 = scmp.ne.s32.totalorder %s29, %s45
      %p47 = scmp.eq.s32.totalorder %s21, 0
      %p48 = por %p46, %p47
      %s50 = sadd.s32 %s49, 1
      %p53 = scmp.eq.s32.totalorder %s15, 1
      %p54 = scmp.ne.s32.totalorder %s49, %s51
      %p55 = scmp.eq.s32.totalorder %s15, 0
      %p56 = por %p54, %p55
      %p57 = scmp.ne.s32.totalorder %s49, %s51
      %p58 = scmp.eq.s32.totalorder %s20, 1
      %p59 = por %p57, %p58
      %p60 = scmp.ne.s32.totalorder %s51, %s52
      %p61 = scmp.eq.s32.totalorder %s20, 0
      %p62 = por %p60, %p61
      %p63 = scmp.ne.s32.totalorder %s51, %s52
      %p64 = scmp.eq.s32.totalorder %s21, 1
      %p65 = por %p63, %p64
      %p67 = scmp.ne.s32.totalorder %s52, %s66
      %p68 = scmp.eq.s32.totalorder %s21, 0
      %p69 = por %p67, %p68
      %s70 = ssub.s32 %s15, %s22
      %p71 = scmp.eq.s32.totalorder %s70, 0
      %s73 = sadd.s32 %s72, 1
      %s74 = scalar_select %p71, %s72, %s73
      %p77 = pneg %p71
      %p78 = scmp.eq.s32.totalorder %s15, 1
      %p79 = por %p77, %p78
      %p80 = scmp.ne.s32.totalorder %s72, %s75
      %p81 = scmp.eq.s32.totalorder %s15, 0
      %p82 = por %p80, %p81
      %p83 = scmp.ne.s32.totalorder %s72, %s75
      %p84 = scmp.eq.s32.totalorder %s20, 1
      %p85 = por %p83, %p84
      %p86 = scmp.ne.s32.totalorder %s75, %s76
      %p87 = scmp.eq.s32.totalorder %s20, 0
      %p88 = por %p86, %p87
      %p89 = scmp.ne.s32.totalorder %s75, %s76
      %p90 = scmp.eq.s32.totalorder %s21, 1
      %p91 = por %p89, %p90
      %p93 = scmp.ne.s32.totalorder %s76, %s92
      %p94 = scmp.eq.s32.totalorder %s21, 0
      %p95 = por %p93, %p94
      %p96 = scmp.le.s32.totalorder 1, %s15
      %p97 = scmp.lt.s32.totalorder %s15, 3
      %p98 = pnand %p96, %p97
      %p99 = pneg %p98
      // Predicated region
      $region9: #{tpu_custom_call.1} parent=5 // pred_check
        _
      $region10: #{tpu_custom_call.1} parent=5 // pred_check_branch
        %101 = sbr.rel (%p98) target = $region12
      $region11: #{tpu_custom_call.1} parent=5 // pred_region
        %s102 = ssub.s32 %s15, 1
        // Predicated region
        $region13: #{tpu_custom_call.1} parent=11 // pred_check
          %p103 = pneg %p62
        $region14: #{tpu_custom_call.1} parent=11 // pred_check_branch
          %105 = sbr.rel (%p103) target = $region16
        $region15: #{tpu_custom_call.1} parent=11 // pred_region
          %s107 = ssub.s32 3200, 3200
          %108 = vsyncadd [#allocation6], %s107
          %s109 = sshll.u32 [#allocation5], 4
          %s110 = int_to_ptr.vmem [resolvable:$true] %s109
          %115 = dma.hbm_to_vmem [thread:$0]  %s1, 3200, %s110, [#allocation6], 64, 64, 4
        $region16: #{tpu_custom_call.1} parent=11 // pred_fallthru
          _
      $region12: #{tpu_custom_call.1} parent=5 // pred_fallthru
        _
      %p116 = scmp.lt.s32.totalorder %s15, 2
      // Predicated region
      $region17: #{tpu_custom_call.1} parent=5 // pred_check
        %p117 = pneg %p116
      $region18: #{tpu_custom_call.1} parent=5 // pred_check_branch
        %119 = sbr.rel (%p117) target = $region20
      $region19: #{tpu_custom_call.1} parent=5 // pred_region
        // Predicated region
        $region21: #{tpu_custom_call.1} parent=19 // pred_check
          %p120 = pneg %p35
        $region22: #{tpu_custom_call.1} parent=19 // pred_check_branch
          %122 = sbr.rel (%p120) target = $region24
        $region23: #{tpu_custom_call.1} parent=19 // pred_region
          %s123 = sand.u32 %s25, 1
          %s124 = scalar_lea.sflag [#allocation3], %s123
          %s125 = sand.u32 %s25, 1
          %s126 = smul.addr %s125, 16
          %s127 = scalar_lea.vmem [#allocation2], %s126
          %s128 = smul.u32 4, %s15
          %s130 = ssub.s32 256, 256
          %131 = vsyncadd %s124, %s130
          %s132 = smul.addr %s128, 64
          %s133 = scalar_lea.hbm %s0, %s132
          %s134 = sshll.u32 %s127, 4
          %s135 = int_to_ptr.vmem [resolvable:$true] %s134
          %140 = dma.hbm_to_vmem [thread:$0]  %s133, 256, %s135, %s124, 64, 64, 4
        $region24: #{tpu_custom_call.1} parent=19 // pred_fallthru
          _
      $region20: #{tpu_custom_call.1} parent=5 // pred_fallthru
        _
      %p141 = scmp.le.s32.totalorder 1, %s15
      %p142 = scmp.lt.s32.totalorder %s15, 3
      %p143 = pnand %p141, %p142
      %p144 = pneg %p143
      // Predicated region
      $region25: #{tpu_custom_call.1} parent=5 // pred_check
        _
      $region26: #{tpu_custom_call.1} parent=5 // pred_check_branch
        %146 = sbr.rel (%p143) target = $region28
      $region27: #{tpu_custom_call.1} parent=5 // pred_region
        %s147 = ssub.s32 %s15, 1
        %s148 = sand.u32 %s28, 1
        %s149 = scalar_lea.sflag [#allocation3], %s148
        %s150 = sand.u32 %s28, 1
        %s151 = smul.addr %s150, 16
        %s152 = scalar_lea.vmem [#allocation2], %s151
        // Predicated region
        $region29: #{tpu_custom_call.1} parent=27 // pred_check
          %p153 = pneg %p41
        $region30: #{tpu_custom_call.1} parent=27 // pred_check_branch
          %155 = sbr.rel (%p153) target = $region32
        $region31: #{tpu_custom_call.1} parent=27 // pred_region
          %156 = dma.done %s149, 256
        $region32: #{tpu_custom_call.1} parent=27 // pred_fallthru
          _
        // Predicated region
        $region33: #{tpu_custom_call.1} parent=27 // pred_check
          %p157 = pneg %p62
        $region34: #{tpu_custom_call.1} parent=27 // pred_check_branch
          %159 = sbr.rel (%p157) target = $region36
        $region35: #{tpu_custom_call.1} parent=27 // pred_region
          %160 = dma.done [#allocation6], 3200
        $region36: #{tpu_custom_call.1} parent=27 // pred_fallthru
          _
        %s161 = sand.u32 %s28, 1
        %s162 = scalar_lea.sflag [#allocation3], %s161
        %s163 = sand.u32 %s28, 1
        %s164 = smul.addr %s163, 16
        %s165 = scalar_lea.vmem [#allocation2], %s164
        %p166 = pneg %p41
        %p167 = pneg %p38
        %p168 = pneg %p62
        %p169 = pneg %p59
        %p170 = pneg %p88
        %p171 = pneg %p85
        %s172 = sand.u32 %s75, 1
        %s173 = scalar_lea.sflag [#allocation4], %s172
        %s174 = sand.u32 %s75, 1
        %s175 = smul.addr %s174, 32
        %s176 = scalar_lea.vmem [#allocation7], %s175
        %s177 = smul.u32 4, %s20
        %s178 = smul.u32 4, %s20
        %v180 = vld [vmem:[#allocation5] sm:$0xf]
        %v181 = vld [vmem:[#allocation5 + $0x4] sm:$0xf]
        %v182 = vld [vmem:[#allocation5 + $0x8] sm:$0xf]
        %v183 = vld [vmem:[#allocation5 + $0xc] sm:$0xf]
        %v184 = vld [vmem:[#allocation5 + $0x10] sm:$0xf]
        %v185 = vld [vmem:[#allocation5 + $0x14] sm:$0xf]
        %v186 = vld [vmem:[#allocation5 + $0x18] sm:$0xf]
        %v187 = vld [vmem:[#allocation5 + $0x1c] sm:$0xf]
        %v188 = vld [vmem:[#allocation5 + $0x20] sm:$0xf]
        %v189 = vld [vmem:[#allocation5 + $0x24] sm:$0xf]
        %v190 = vld [vmem:[#allocation5 + $0x28] sm:$0xf]
        %v191 = vld [vmem:[#allocation5 + $0x2c] sm:$0xf]
        %v192 = vld [vmem:[#allocation5 + $0x30] sm:$0xf]
        %v193 = vld [vmem:[#allocation5 + $0x34] sm:$0xf]
        %v194 = vld [vmem:[#allocation5 + $0x38] sm:$0xf]
        %v195 = vld [vmem:[#allocation5 + $0x3c] sm:$0xf]
        %v196 = vld [vmem:[%s152] sm:$0xf]
        %v197 = vld [vmem:[%s152 + $0x4] sm:$0xf]
        %v200 = vunpack.c.l.b16 %v196
        %v201 = vunpack.c.l.b16 %v197
        %v202 = vpack.c.b16 %v201, %v200
        %v220 = vunpack.c.l.b16 %v180
        %v221 = vunpack.c.l.b16 %v181
        %v222 = vunpack.c.l.b16 %v182
        %v223 = vunpack.c.l.b16 %v183
        %v224 = vunpack.c.l.b16 %v184
        %v225 = vunpack.c.l.b16 %v185
        %v226 = vunpack.c.l.b16 %v186
        %v227 = vunpack.c.l.b16 %v187
        %v228 = vunpack.c.l.b16 %v188
        %v229 = vunpack.c.l.b16 %v189
        %v230 = vunpack.c.l.b16 %v190
        %v231 = vunpack.c.l.b16 %v191
        %v232 = vunpack.c.l.b16 %v192
        %v233 = vunpack.c.l.b16 %v193
        %v234 = vunpack.c.l.b16 %v194
        %v235 = vunpack.c.l.b16 %v195
        %v236 = vpack.c.b16 %v221, %v220
        %v237 = vpack.c.b16 %v223, %v222
        %v238 = vpack.c.b16 %v225, %v224
        %v239 = vpack.c.b16 %v227, %v226
        %v240 = vpack.c.b16 %v229, %v228
        %v241 = vpack.c.b16 %v231, %v230
        %v242 = vpack.c.b16 %v233, %v232
        %v243 = vpack.c.b16 %v235, %v234
        %252 = vmatprep.subr.bf16.mxu0 0
        %253 = vmatpush1.bf16.msra.mxu0 %v236
        %254 = vmatprep.subr.bf16.mxu0 0
        %255 = vmatpush1.bf16.msra.mxu0 %v237
        %256 = vmatprep.subr.bf16.mxu0 0
        %257 = vmatpush1.bf16.msra.mxu0 %v238
        %258 = vmatprep.subr.bf16.mxu0 0
        %259 = vmatpush1.bf16.msra.mxu0 %v239
        %260 = vmatprep.subr.bf16.mxu0 0
        %261 = vmatpush1.bf16.msra.mxu0 %v240
        %262 = vmatprep.subr.bf16.mxu0 0
        %263 = vmatpush1.bf16.msra.mxu0 %v241
        %264 = vmatprep.subr.bf16.mxu0 0
        %265 = vmatpush1.bf16.msra.mxu0 %v242
        %266 = vmatprep.subr.bf16.mxu0 0
        %267 = vmatpush1.bf16.msra.mxu0 %v243
        %268 = vmatprep.subr.bf16.mxu0 0
        %269 = vmatpush1.bf16.msra.mxu0 0
        %270 = vmatprep.subr.bf16.mxu0 0
        %271 = vmatpush1.bf16.msra.mxu0 0
        %272 = vmatprep.subr.bf16.mxu0 0
        %273 = vmatpush1.bf16.msra.mxu0 0
        %274 = vmatprep.subr.bf16.mxu0 0
        %275 = vmatpush1.bf16.msra.mxu0 0
        %276 = vmatprep.subr.bf16.mxu0 0
        %277 = vmatpush1.bf16.msra.mxu0 0
        %278 = vmatprep.subr.bf16.mxu0 0
        %279 = vmatpush1.bf16.msra.mxu0 0
        %280 = vmatprep.subr.bf16.mxu0 0
        %281 = vmatpush1.bf16.msra.mxu0 0
        %282 = vmatprep.subr.bf16.mxu0 0
        %283 = vmatpush1.bf16.msra.mxu0 0
        %284 = vmatprep.mubr.bf16.mxu0 0
        %285 = vmatmul.mubr.bf16.gmra.mrb[0].mxu0 %v202
        %v286 = vpop.f32.mrb[0].mxu0
        %v287 = vadd.f32 0.0, %v286
        %v288 = vpop.f32.mrb[0].mxu0
        %v289 = vpop.f32.mrb[0].mxu0
        %v290 = vadd.f32 0.0, %v289
        %v291 = vpop.f32.mrb[0].mxu0
        %292 = vdwg.mxu0
        %v293 = vtanh.pop %v287
        %v294 = vtanh.pop %v290
        %v295 = vld [vmem:[%s152 + $0x8] sm:$0xf]
        %v296 = vld [vmem:[%s152 + $0xc] sm:$0xf]
        %v299 = vunpack.c.l.b16 %v295
        %v300 = vunpack.c.l.b16 %v296
        %v301 = vpack.c.b16 %v300, %v299
        %303 = vmatprep.subr.bf16.mxu0 0
        %304 = vmatpush1.bf16.msra.mxu0 %v236
        %305 = vmatprep.subr.bf16.mxu0 0
        %306 = vmatpush1.bf16.msra.mxu0 %v237
        %307 = vmatprep.subr.bf16.mxu0 0
        %308 = vmatpush1.bf16.msra.mxu0 %v238
        %309 = vmatprep.subr.bf16.mxu0 0
        %310 = vmatpush1.bf16.msra.mxu0 %v239
        %311 = vmatprep.subr.bf16.mxu0 0
        %312 = vmatpush1.bf16.msra.mxu0 %v240
        %313 = vmatprep.subr.bf16.mxu0 0
        %314 = vmatpush1.bf16.msra.mxu0 %v241
        %315 = vmatprep.subr.bf16.mxu0 0
        %316 = vmatpush1.bf16.msra.mxu0 %v242
        %317 = vmatprep.subr.bf16.mxu0 0
        %318 = vmatpush1.bf16.msra.mxu0 %v243
        %319 = vmatprep.subr.bf16.mxu0 0
        %320 = vmatpush1.bf16.msra.mxu0 0
        %321 = vmatprep.subr.bf16.mxu0 0
        %322 = vmatpush1.bf16.msra.mxu0 0
        %323 = vmatprep.subr.bf16.mxu0 0
        %324 = vmatpush1.bf16.msra.mxu0 0
        %325 = vmatprep.subr.bf16.mxu0 0
        %326 = vmatpush1.bf16.msra.mxu0 0
        %327 = vmatprep.subr.bf16.mxu0 0
        %328 = vmatpush1.bf16.msra.mxu0 0
        %329 = vmatprep.subr.bf16.mxu0 0
        %330 = vmatpush1.bf16.msra.mxu0 0
        %331 = vmatprep.subr.bf16.mxu0 0
        %332 = vmatpush1.bf16.msra.mxu0 0
        %333 = vmatprep.subr.bf16.mxu0 0
        %334 = vmatpush1.bf16.msra.mxu0 0
        %335 = vmatprep.mubr.bf16.mxu0 0
        %336 = vmatmul.mubr.bf16.gmra.mrb[0].mxu0 %v301
        %v337 = vpop.f32.mrb[0].mxu0
        %v338 = vadd.f32 0.0, %v337
        %v339 = vpop.f32.mrb[0].mxu0
        %v340 = vpop.f32.mrb[0].mxu0
        %v341 = vadd.f32 0.0, %v340
        %v342 = vpop.f32.mrb[0].mxu0
        %343 = vdwg.mxu0
        %v344 = vtanh.pop %v338
        %v345 = vtanh.pop %v341
        %v346 = vld [vmem:[#allocation5 + $0x40] sm:$0xf]
        %v347 = vld [vmem:[#allocation5 + $0x44] sm:$0xf]
        %v348 = vld [vmem:[#allocation5 + $0x48] sm:$0xf]
        %v349 = vld [vmem:[#allocation5 + $0x4c] sm:$0xf]
        %v350 = vld [vmem:[#allocation5 + $0x50] sm:$0xf]
        %v351 = vld [vmem:[#allocation5 + $0x54] sm:$0xf]
        %v352 = vld [vmem:[#allocation5 + $0x58] sm:$0xf]
        %v353 = vld [vmem:[#allocation5 + $0x5c] sm:$0xf]
        %v354 = vld [vmem:[#allocation5 + $0x60] sm:$0xf]
        %v355 = vld [vmem:[#allocation5 + $0x64] sm:$0xf]
        %v356 = vld [vmem:[#allocation5 + $0x68] sm:$0xf]
        %v357 = vld [vmem:[#allocation5 + $0x6c] sm:$0xf]
        %v358 = vld [vmem:[#allocation5 + $0x70] sm:$0xf]
        %v359 = vld [vmem:[#allocation5 + $0x74] sm:$0xf]
        %v360 = vld [vmem:[#allocation5 + $0x78] sm:$0xf]
        %v361 = vld [vmem:[#allocation5 + $0x7c] sm:$0xf]
        %v362 = vld [vmem:[#allocation5 + $0x80] sm:$0x1]
        %v363 = vunpack.c.l.bf16 %v362
        %v364 = vpack.c.bf16 %v294, %v293
        %v365 = vlaneseq
        %v366 = vshrl.u32 %v365, 7
        %v367 = vsub.s32 0, %v366
        %v368 = vrot.slane %v363, %v367
        %v385 = vunpack.c.l.b16 %v346
        %v386 = vunpack.c.l.b16 %v347
        %v387 = vunpack.c.l.b16 %v348
        %v388 = vunpack.c.l.b16 %v349
        %v389 = vunpack.c.l.b16 %v350
        %v390 = vunpack.c.l.b16 %v351
        %v391 = vunpack.c.l.b16 %v352
        %v392 = vunpack.c.l.b16 %v353
        %v393 = vunpack.c.l.b16 %v354
        %v394 = vunpack.c.l.b16 %v355
        %v395 = vunpack.c.l.b16 %v356
        %v396 = vunpack.c.l.b16 %v357
        %v397 = vunpack.c.l.b16 %v358
        %v398 = vunpack.c.l.b16 %v359
        %v399 = vunpack.c.l.b16 %v360
        %v400 = vunpack.c.l.b16 %v361
        %v401 = vpack.c.b16 %v386, %v385
        %v402 = vpack.c.b16 %v388, %v387
        %v403 = vpack.c.b16 %v390, %v389
        %v404 = vpack.c.b16 %v392, %v391
        %v405 = vpack.c.b16 %v394, %v393
        %v406 = vpack.c.b16 %v396, %v395
        %v407 = vpack.c.b16 %v398, %v397
        %v408 = vpack.c.b16 %v400, %v399
        %417 = vmatprep.subr.bf16.mxu0 0
        %418 = vmatpush1.bf16.msra.mxu0 %v401
        %419 = vmatprep.subr.bf16.mxu0 0
        %420 = vmatpush1.bf16.msra.mxu0 %v402
        %421 = vmatprep.subr.bf16.mxu0 0
        %422 = vmatpush1.bf16.msra.mxu0 %v403
        %423 = vmatprep.subr.bf16.mxu0 0
        %424 = vmatpush1.bf16.msra.mxu0 %v404
        %425 = vmatprep.subr.bf16.mxu0 0
        %426 = vmatpush1.bf16.msra.mxu0 %v405
        %427 = vmatprep.subr.bf16.mxu0 0
        %428 = vmatpush1.bf16.msra.mxu0 %v406
        %429 = vmatprep.subr.bf16.mxu0 0
        %430 = vmatpush1.bf16.msra.mxu0 %v407
        %431 = vmatprep.subr.bf16.mxu0 0
        %432 = vmatpush1.bf16.msra.mxu0 %v408
        %433 = vmatprep.subr.bf16.mxu0 0
        %434 = vmatpush1.bf16.msra.mxu0 0
        %435 = vmatprep.subr.bf16.mxu0 0
        %436 = vmatpush1.bf16.msra.mxu0 0
        %437 = vmatprep.subr.bf16.mxu0 0
        %438 = vmatpush1.bf16.msra.mxu0 0
        %439 = vmatprep.subr.bf16.mxu0 0
        %440 = vmatpush1.bf16.msra.mxu0 0
        %441 = vmatprep.subr.bf16.mxu0 0
        %442 = vmatpush1.bf16.msra.mxu0 0
        %443 = vmatprep.subr.bf16.mxu0 0
        %444 = vmatpush1.bf16.msra.mxu0 0
        %445 = vmatprep.subr.bf16.mxu0 0
        %446 = vmatpush1.bf16.msra.mxu0 0
        %447 = vmatprep.subr.bf16.mxu0 0
        %448 = vmatpush1.bf16.msra.mxu0 0
        %449 = vmatprep.mubr.bf16.mxu0 0
        %450 = vmatmul.mubr.bf16.gmra.mrb[0].mxu0 %v364
        %v451 = vpop.f32.mrb[0].mxu0
        %v452 = vadd.f32 %v368, %v451
        %v453 = vpop.f32.mrb[0].mxu0
        %v454 = vpop.f32.mrb[0].mxu0
        %v455 = vadd.f32 %v368, %v454
        %v456 = vpop.f32.mrb[0].mxu0
        %457 = vdwg.mxu0
        %v458 = vtanh.pop %v452
        %v459 = vtanh.pop %v455
        %v460 = vpack.c.bf16 %v345, %v344
        %461 = vmatprep.subr.bf16.mxu0 0
        %462 = vmatpush1.bf16.msra.mxu0 %v401
        %463 = vmatprep.subr.bf16.mxu0 0
        %464 = vmatpush1.bf16.msra.mxu0 %v402
        %465 = vmatprep.subr.bf16.mxu0 0
        %466 = vmatpush1.bf16.msra.mxu0 %v403
        %467 = vmatprep.subr.bf16.mxu0 0
        %468 = vmatpush1.bf16.msra.mxu0 %v404
        %469 = vmatprep.subr.bf16.mxu0 0
        %470 = vmatpush1.bf16.msra.mxu0 %v405
        %471 = vmatprep.subr.bf16.mxu0 0
        %472 = vmatpush1.bf16.msra.mxu0 %v406
        %473 = vmatprep.subr.bf16.mxu0 0
        %474 = vmatpush1.bf16.msra.mxu0 %v407
        %475 = vmatprep.subr.bf16.mxu0 0
        %476 = vmatpush1.bf16.msra.mxu0 %v408
        %477 = vmatprep.subr.bf16.mxu0 0
        %478 = vmatpush1.bf16.msra.mxu0 0
        %479 = vmatprep.subr.bf16.mxu0 0
        %480 = vmatpush1.bf16.msra.mxu0 0
        %481 = vmatprep.subr.bf16.mxu0 0
        %482 = vmatpush1.bf16.msra.mxu0 0
        %483 = vmatprep.subr.bf16.mxu0 0
        %484 = vmatpush1.bf16.msra.mxu0 0
        %485 = vmatprep.subr.bf16.mxu0 0
        %486 = vmatpush1.bf16.msra.mxu0 0
        %487 = vmatprep.subr.bf16.mxu0 0
        %488 = vmatpush1.bf16.msra.mxu0 0
        %489 = vmatprep.subr.bf16.mxu0 0
        %490 = vmatpush1.bf16.msra.mxu0 0
        %491 = vmatprep.subr.bf16.mxu0 0
        %492 = vmatpush1.bf16.msra.mxu0 0
        %493 = vmatprep.mubr.bf16.mxu0 0
        %494 = vmatmul.mubr.bf16.gmra.mrb[0].mxu0 %v460
        %v495 = vpop.f32.mrb[0].mxu0
        %v496 = vadd.f32 %v368, %v495
        %v497 = vpop.f32.mrb[0].mxu0
        %v498 = vpop.f32.mrb[0].mxu0
        %v499 = vadd.f32 %v368, %v498
        %v500 = vpop.f32.mrb[0].mxu0
        %501 = vdwg.mxu0
        %v502 = vtanh.pop %v496
        %v503 = vtanh.pop %v499
        %v504 = vld [vmem:[#allocation5 + $0x84] sm:$0xf]
        %v505 = vld [vmem:[#allocation5 + $0x88] sm:$0xf]
        %v506 = vld [vmem:[#allocation5 + $0x8c] sm:$0xf]
        %v507 = vld [vmem:[#allocation5 + $0x90] sm:$0xf]
        %v508 = vld [vmem:[#allocation5 + $0x94] sm:$0xf]
        %v509 = vld [vmem:[#allocation5 + $0x98] sm:$0xf]
        %v510 = vld [vmem:[#allocation5 + $0x9c] sm:$0xf]
        %v511 = vld [vmem:[#allocation5 + $0xa0] sm:$0xf]
        %v512 = vld [vmem:[#allocation5 + $0xa4] sm:$0xf]
        %v513 = vld [vmem:[#allocation5 + $0xa8] sm:$0xf]
        %v514 = vld [vmem:[#allocation5 + $0xac] sm:$0xf]
        %v515 = vld [vmem:[#allocation5 + $0xb0] sm:$0xf]
        %v516 = vld [vmem:[#allocation5 + $0xb4] sm:$0xf]
        %v517 = vld [vmem:[#allocation5 + $0xb8] sm:$0xf]
        %v518 = vld [vmem:[#allocation5 + $0xbc] sm:$0xf]
        %v519 = vld [vmem:[#allocation5 + $0xc0] sm:$0xf]
        %v520 = vld [vmem:[#allocation5 + $0xc4] sm:$0x1]
        %v521 = vunpack.c.l.bf16 %v520
        %v522 = vpack.c.bf16 %v459, %v458
        %v523 = vlaneseq
        %v524 = vshrl.u32 %v523, 7
        %v525 = vsub.s32 0, %v524
        %v526 = vrot.slane %v521, %v525
        %v543 = vunpack.c.l.b16 %v504
        %v544 = vunpack.c.l.b16 %v505
        %v545 = vunpack.c.l.b16 %v506
        %v546 = vunpack.c.l.b16 %v507
        %v547 = vunpack.c.l.b16 %v508
        %v548 = vunpack.c.l.b16 %v509
        %v549 = vunpack.c.l.b16 %v510
        %v550 = vunpack.c.l.b16 %v511
        %v551 = vunpack.c.l.b16 %v512
        %v552 = vunpack.c.l.b16 %v513
        %v553 = vunpack.c.l.b16 %v514
        %v554 = vunpack.c.l.b16 %v515
        %v555 = vunpack.c.l.b16 %v516
        %v556 = vunpack.c.l.b16 %v517
        %v557 = vunpack.c.l.b16 %v518
        %v558 = vunpack.c.l.b16 %v519
        %v559 = vpack.c.b16 %v544, %v543
        %v560 = vpack.c.b16 %v546, %v545
        %v561 = vpack.c.b16 %v548, %v547
        %v562 = vpack.c.b16 %v550, %v549
        %v563 = vpack.c.b16 %v552, %v551
        %v564 = vpack.c.b16 %v554, %v553
        %v565 = vpack.c.b16 %v556, %v555
        %v566 = vpack.c.b16 %v558, %v557
        %575 = vmatprep.subr.bf16.mxu0 0
        %576 = vmatpush1.bf16.msra.mxu0 %v559
        %577 = vmatprep.subr.bf16.mxu0 0
        %578 = vmatpush1.bf16.msra.mxu0 %v560
        %579 = vmatprep.subr.bf16.mxu0 0
        %580 = vmatpush1.bf16.msra.mxu0 %v561
        %581 = vmatprep.subr.bf16.mxu0 0
        %582 = vmatpush1.bf16.msra.mxu0 %v562
        %583 = vmatprep.subr.bf16.mxu0 0
        %584 = vmatpush1.bf16.msra.mxu0 %v563
        %585 = vmatprep.subr.bf16.mxu0 0
        %586 = vmatpush1.bf16.msra.mxu0 %v564
        %587 = vmatprep.subr.bf16.mxu0 0
        %588 = vmatpush1.bf16.msra.mxu0 %v565
        %589 = vmatprep.subr.bf16.mxu0 0
        %590 = vmatpush1.bf16.msra.mxu0 %v566
        %591 = vmatprep.subr.bf16.mxu0 0
        %592 = vmatpush1.bf16.msra.mxu0 0
        %593 = vmatprep.subr.bf16.mxu0 0
        %594 = vmatpush1.bf16.msra.mxu0 0
        %595 = vmatprep.subr.bf16.mxu0 0
        %596 = vmatpush1.bf16.msra.mxu0 0
        %597 = vmatprep.subr.bf16.mxu0 0
        %598 = vmatpush1.bf16.msra.mxu0 0
        %599 = vmatprep.subr.bf16.mxu0 0
        %600 = vmatpush1.bf16.msra.mxu0 0
        %601 = vmatprep.subr.bf16.mxu0 0
        %602 = vmatpush1.bf16.msra.mxu0 0
        %603 = vmatprep.subr.bf16.mxu0 0
        %604 = vmatpush1.bf16.msra.mxu0 0
        %605 = vmatprep.subr.bf16.mxu0 0
        %606 = vmatpush1.bf16.msra.mxu0 0
        %607 = vmatprep.mubr.bf16.mxu0 0
        %608 = vmatmul.mubr.bf16.gmra.mrb[0].mxu0 %v522
        %v609 = vpop.f32.mrb[0].mxu0
        %v610 = vadd.f32 %v526, %v609
        %v611 = vpop.f32.mrb[0].mxu0
        %v612 = vpop.f32.mrb[0].mxu0
        %v613 = vadd.f32 %v526, %v612
        %v614 = vpop.f32.mrb[0].mxu0
        %615 = vdwg.mxu0
        %616 = vst [vmem:[%s176] sm:$0xff] %v610
        %617 = vst [vmem:[%s176 + $0x8] sm:$0xff] %v613
        %v618 = vpack.c.bf16 %v503, %v502
        %619 = vmatprep.subr.bf16.mxu0 0
        %620 = vmatpush1.bf16.msra.mxu0 %v559
        %621 = vmatprep.subr.bf16.mxu0 0
        %622 = vmatpush1.bf16.msra.mxu0 %v560
        %623 = vmatprep.subr.bf16.mxu0 0
        %624 = vmatpush1.bf16.msra.mxu0 %v561
        %625 = vmatprep.subr.bf16.mxu0 0
        %626 = vmatpush1.bf16.msra.mxu0 %v562
        %627 = vmatprep.subr.bf16.mxu0 0
        %628 = vmatpush1.bf16.msra.mxu0 %v563
        %629 = vmatprep.subr.bf16.mxu0 0
        %630 = vmatpush1.bf16.msra.mxu0 %v564
        %631 = vmatprep.subr.bf16.mxu0 0
        %632 = vmatpush1.bf16.msra.mxu0 %v565
        %633 = vmatprep.subr.bf16.mxu0 0
        %634 = vmatpush1.bf16.msra.mxu0 %v566
        %635 = vmatprep.subr.bf16.mxu0 0
        %636 = vmatpush1.bf16.msra.mxu0 0
        %637 = vmatprep.subr.bf16.mxu0 0
        %638 = vmatpush1.bf16.msra.mxu0 0
        %639 = vmatprep.subr.bf16.mxu0 0
        %640 = vmatpush1.bf16.msra.mxu0 0
        %641 = vmatprep.subr.bf16.mxu0 0
        %642 = vmatpush1.bf16.msra.mxu0 0
        %643 = vmatprep.subr.bf16.mxu0 0
        %644 = vmatpush1.bf16.msra.mxu0 0
        %645 = vmatprep.subr.bf16.mxu0 0
        %646 = vmatpush1.bf16.msra.mxu0 0
        %647 = vmatprep.subr.bf16.mxu0 0
        %648 = vmatpush1.bf16.msra.mxu0 0
        %649 = vmatprep.subr.bf16.mxu0 0
        %650 = vmatpush1.bf16.msra.mxu0 0
        %651 = vmatprep.mubr.bf16.mxu0 0
        %652 = vmatmul.mubr.bf16.gmra.mrb[0].mxu0 %v618
        %v653 = vpop.f32.mrb[0].mxu0
        %v654 = vadd.f32 %v526, %v653
        %v655 = vpop.f32.mrb[0].mxu0
        %v656 = vpop.f32.mrb[0].mxu0
        %v657 = vadd.f32 %v526, %v656
        %v658 = vpop.f32.mrb[0].mxu0
        %659 = vdwg.mxu0
        %660 = vst [vmem:[%s176 + $0x10] sm:$0xff] %v654
        %661 = vst [vmem:[%s176 + $0x18] sm:$0xff] %v657
        %s662 = sand.u32 %s75, 1
        %s663 = scalar_lea.sflag [#allocation4], %s662
        %s664 = sand.u32 %s75, 1
        %s665 = smul.addr %s664, 32
        %s666 = scalar_lea.vmem [#allocation7], %s665
        // Predicated region
        $region37: #{tpu_custom_call.1} parent=27 // pred_check
          %p667 = pneg %p85
        $region38: #{tpu_custom_call.1} parent=27 // pred_check_branch
          %669 = sbr.rel (%p667) target = $region40
        $region39: #{tpu_custom_call.1} parent=27 // pred_region
          %s670 = smul.u32 4, %s20
          %s672 = ssub.s32 512, 512
          %673 = vsyncadd %s663, %s672
          %s674 = smul.addr %s670, 128
          %s675 = scalar_lea.hbm %s2, %s674
          %s676 = sshll.u32 %s666, 4
          %s677 = int_to_ptr.vmem [resolvable:$true] %s676
          %682 = dma.vmem_to_hbm [thread:$0]  %s677, 512, %s675, %s663, 128, 128, 8
        $region40: #{tpu_custom_call.1} parent=27 // pred_fallthru
          _
      $region28: #{tpu_custom_call.1} parent=5 // pred_fallthru
        _
      %p683 = scmp.le.s32.totalorder 2, %s15
      // Predicated region
      $region41: #{tpu_custom_call.1} parent=5 // pred_check
        %p684 = pneg %p683
      $region42: #{tpu_custom_call.1} parent=5 // pred_check_branch
        %686 = sbr.rel (%p684) target = $region44
      $region43: #{tpu_custom_call.1} parent=5 // pred_region
        %s687 = ssub.s32 %s15, 2
        // Predicated region
        $region45: #{tpu_custom_call.1} parent=43 // pred_check
          %p688 = pneg %p91
        $region46: #{tpu_custom_call.1} parent=43 // pred_check_branch
          %690 = sbr.rel (%p688) target = $region48
        $region47: #{tpu_custom_call.1} parent=43 // pred_region
          %s691 = sand.u32 %s76, 1
          %s692 = scalar_lea.sflag [#allocation4], %s691
          %s693 = sand.u32 %s76, 1
          %s694 = smul.addr %s693, 32
          %s695 = scalar_lea.vmem [#allocation7], %s694
          %696 = dma.done %s692, 512
        $region48: #{tpu_custom_call.1} parent=43 // pred_fallthru
          _
      $region44: #{tpu_custom_call.1} parent=5 // pred_fallthru
        _
    $region6: #{tpu_custom_call.1} parent=1 // loop_footer
      %s19 = sadd.s32 1, %s15
    $region7: #{tpu_custom_call.1} parent=1 // loop_footer_branch
      %14 = sbr.rel target = $region3
    $region8: #{tpu_custom_call.1} parent=1 // loop_exit
      _
    %697 = vsyncpa [#allocation3], 1
    %s698 = scalar_lea.sflag [#allocation3], 1
    %699 = vsyncpa %s698, 1
    %700 = vsyncpa [#allocation6], 1
    %701 = vsyncpa [#allocation4], 1
    %s702 = scalar_lea.sflag [#allocation4], 1
    %703 = vsyncpa %s702, 1

// kernel: tpu_custom_call.1
$region0: #{tpu_custom_call.1}
  #allocation0 [shape = 'u32[]', space=smem, size = 0x4, offset = 0x4, fixed_abs, tag = 'smem constant byte address 0x4 - core index']
  #allocation1 [shape = 'u32[144,128]{1,0:T(1,128)}', space=vmem, size = 0x12000, scoped, tag = 'internal scratch']
  %s0 = inlined_call_operand.hbm [shape: bf16[64,128], index: 0, kind: input, shape index: {}]
  %s1 = inlined_call_operand.hbm [shape: bf16[400,128], index: 1, kind: input, shape index: {}]
  %s2 = inlined_call_operand.hbm [shape: f32[64,128], index: 2, kind: output, shape index: {}]
  %s3 = sld [smem:[#allocation0]]
  $region49: #{tpu_custom_call.1} parent=0
    _
  %s5 = ssub.s32 1, %s3
  %s6 = scalar_select 0, %s5, %s3
  $region1: #{tpu_custom_call.1} parent=0
    #allocation2 [shape = 'u8[16384]{0}', space=vmem, size = 0x4000, scoped, tag = 'input window, operand 0']
    #allocation3 [shape = 's32[2]{0}', space=sflag, size = 0x8, scoped, tag = 'scoped memory for tpu_custom_call.1']
    #allocation4 [shape = 's32[2]{0}', space=sflag, size = 0x8, scoped, tag = 'scoped memory for tpu_custom_call.1']
    #allocation5 [shape = 'u8[102400]{0}', space=vmem, size = 0x19000, scoped, tag = 'input window, operand 1, single buffered']
    #allocation6 [shape = 's32[1]{0}', space=sflag, size = 0x4, scoped, tag = 'scoped memory for tpu_custom_call.1']
    #allocation7 [shape = 'u8[32768]{0}', space=vmem, size = 0x8000, scoped, tag = 'output window, operand 0']
    %7 = vsyncpa [#allocation3], 0
    %s8 = scalar_lea.sflag [#allocation3], 1
    %9 = vsyncpa %s8, 0
    %10 = vsyncpa [#allocation6], 0
    %11 = vsyncpa [#allocation4], 0
    %s12 = scalar_lea.sflag [#allocation4], 1
    %13 = vsyncpa %s12, 0
    loop: start=0, step=1, limit=4
    $region2: #{tpu_custom_call.1} parent=1 // loop_pre_header
      _
    $region3: #{tpu_custom_call.1} parent=1 // loop_header
      %s15 = sphi 0, %s19
      %p16 = scmp.ge.s32.totalorder %s15, 4
      %s25 = sphi 0, %s27
      %s28 = sphi 0, %s25
      %s29 = sphi 0, %s28
      %s45 = sphi 0, %s29
      %s49 = sphi 0, %s49
      %s51 = sphi 0, %s49
      %s52 = sphi 0, %s51
      %s66 = sphi 0, %s52
      %s72 = sphi 0, %s74
      %s75 = sphi 0, %s72
      %s76 = sphi 0, %s75
      %s92 = sphi 0, %s76
    $region4: #{tpu_custom_call.1} parent=1 // loop_header_branch
      %18 = sbr.rel (%p16) target = $region8
    $region5: #{tpu_custom_call.1} parent=1 // loop_body
      %s20 = ssub.s32 %s15, 1
      %s21 = ssub.s32 %s15, 2
      %s22 = sadd.s32 %s15, 1
      %s23 = ssub.s32 %s15, %s22
      %p24 = scmp.eq.s32.totalorder %s23, 0
      %s26 = sadd.s32 %s25, 1
      %s27 = scalar_select %p24, %s25, %s26
      %p30 = pneg %p24
      %p31 = scmp.eq.s32.totalorder %s15, 1
      %p32 = por %p30, %p31
      %p33 = scmp.ne.s32.totalorder %s25, %s28
      %p34 = scmp.eq.s32.totalorder %s15, 0
      %p35 = por %p33, %p34
      %p36 = scmp.ne.s32.totalorder %s25, %s28
      %p37 = scmp.eq.s32.totalorder %s20, 1
      %p38 = por %p36, %p37
      %p39 = scmp.ne.s32.totalorder %s28, %s29
      %p40 = scmp.eq.s32.totalorder %s20, 0
      %p41 = por %p39, %p40
      %p42 = scmp.ne.s32.totalorder %s28, %s29
      %p43 = scmp.eq.s32.totalorder %s21, 1
      %p44 = por %p42, %p43
      %p46 = scmp.ne.s32.totalorder %s29, %s45
      %p47 = scmp.eq.s32.totalorder %s21, 0
      %p48 = por %p46, %p47
      %s50 = sadd.s32 %s49, 1
      %p53 = scmp.eq.s32.totalorder %s15, 1
      %p54 = scmp.ne.s32.totalorder %s49, %s51
      %p55 = scmp.eq.s32.totalorder %s15, 0
      %p56 = por %p54, %p55
      %p57 = scmp.ne.s32.totalorder %s49, %s51
      %p58 = scmp.eq.s32.totalorder %s20, 1
      %p59 = por %p57, %p58
      %p60 = scmp.ne.s32.totalorder %s51, %s52
      %p61 = scmp.eq.s32.totalorder %s20, 0
      %p62 = por %p60, %p61
      %p63 = scmp.ne.s32.totalorder %s51, %s52
      %p64 = scmp.eq.s32.totalorder %s21, 1
      %p65 = por %p63, %p64
      %p67 = scmp.ne.s32.totalorder %s52, %s66
      %p68 = scmp.eq.s32.totalorder %s21, 0
      %p69 = por %p67, %p68
      %s70 = ssub.s32 %s15, %s22
      %p71 = scmp.eq.s32.totalorder %s70, 0
      %s73 = sadd.s32 %s72, 1
      %s74 = scalar_select %p71, %s72, %s73
      %p77 = pneg %p71
      %p78 = scmp.eq.s32.totalorder %s15, 1
      %p79 = por %p77, %p78
      %p80 = scmp.ne.s32.totalorder %s72, %s75
      %p81 = scmp.eq.s32.totalorder %s15, 0
      %p82 = por %p80, %p81
      %p83 = scmp.ne.s32.totalorder %s72, %s75
      %p84 = scmp.eq.s32.totalorder %s20, 1
      %p85 = por %p83, %p84
      %p86 = scmp.ne.s32.totalorder %s75, %s76
      %p87 = scmp.eq.s32.totalorder %s20, 0
      %p88 = por %p86, %p87
      %p89 = scmp.ne.s32.totalorder %s75, %s76
      %p90 = scmp.eq.s32.totalorder %s21, 1
      %p91 = por %p89, %p90
      %p93 = scmp.ne.s32.totalorder %s76, %s92
      %p94 = scmp.eq.s32.totalorder %s21, 0
      %p95 = por %p93, %p94
      %p96 = scmp.le.s32.totalorder 1, %s15
      %p97 = scmp.lt.s32.totalorder %s15, 3
      %p98 = pnand %p96, %p97
      %p99 = pneg %p98
      // Predicated region
      $region9: #{tpu_custom_call.1} parent=5 // pred_check
        _
      $region10: #{tpu_custom_call.1} parent=5 // pred_check_branch
        %101 = sbr.rel (%p98) target = $region12
      $region11: #{tpu_custom_call.1} parent=5 // pred_region
        %s102 = ssub.s32 %s15, 1
        // Predicated region
        $region13: #{tpu_custom_call.1} parent=11 // pred_check
          %p103 = pneg %p62
        $region14: #{tpu_custom_call.1} parent=11 // pred_check_branch
          %105 = sbr.rel (%p103) target = $region16
        $region15: #{tpu_custom_call.1} parent=11 // pred_region
          %s107 = ssub.s32 3200, 3200
          %108 = vsyncadd [#allocation6], %s107
          %s109 = sshll.u32 [#allocation5], 4
          %s110 = int_to_ptr.vmem [resolvable:$true] %s109
          %115 = dma.hbm_to_vmem [thread:$0]  %s1, 3200, %s110, [#allocation6], 64, 64, 4
        $region16: #{tpu_custom_call.1} parent=11 // pred_fallthru
          _
      $region12: #{tpu_custom_call.1} parent=5 // pred_fallthru
        _
      %p116 = scmp.lt.s32.totalorder %s15, 2
      // Predicated region
      $region17: #{tpu_custom_call.1} parent=5 // pred_check
        %p117 = pneg %p116
      $region18: #{tpu_custom_call.1} parent=5 // pred_check_branch
        %119 = sbr.rel (%p117) target = $region20
      $region19: #{tpu_custom_call.1} parent=5 // pred_region
        // Predicated region
        $region21: #{tpu_custom_call.1} parent=19 // pred_check
          %p120 = pneg %p35
        $region22: #{tpu_custom_call.1} parent=19 // pred_check_branch
          %122 = sbr.rel (%p120) target = $region24
        $region23: #{tpu_custom_call.1} parent=19 // pred_region
          %s123 = sand.u32 %s25, 1
          %s124 = scalar_lea.sflag [#allocation3], %s123
          %s125 = sand.u32 %s25, 1
          %s126 = smul.addr %s125, 16
          %s127 = scalar_lea.vmem [#allocation2], %s126
          %s128 = smul.u32 4, %s15
          %s130 = ssub.s32 256, 256
          %131 = vsyncadd %s124, %s130
          %s132 = smul.addr %s128, 64
          %s133 = scalar_lea.hbm %s0, %s132
          %s134 = sshll.u32 %s127, 4
          %s135 = int_to_ptr.vmem [resolvable:$true] %s134
          %140 = dma.hbm_to_vmem [thread:$0]  %s133, 256, %s135, %s124, 64, 64, 4
        $region24: #{tpu_custom_call.1} parent=19 // pred_fallthru
          _
      $region20: #{tpu_custom_call.1} parent=5 // pred_fallthru
        _
      %p141 = scmp.le.s32.totalorder 1, %s15
      %p142 = scmp.lt.s32.totalorder %s15, 3
      %p143 = pnand %p141, %p142
      %p144 = pneg %p143
      // Predicated region
      $region25: #{tpu_custom_call.1} parent=5 // pred_check
        _
      $region26: #{tpu_custom_call.1} parent=5 // pred_check_branch
        %146 = sbr.rel (%p143) target = $region28
      $region27: #{tpu_custom_call.1} parent=5 // pred_region
        %s147 = ssub.s32 %s15, 1
        %s148 = sand.u32 %s28, 1
        %s149 = scalar_lea.sflag [#allocation3], %s148
        %s150 = sand.u32 %s28, 1
        %s151 = smul.addr %s150, 16
        %s152 = scalar_lea.vmem [#allocation2], %s151
        // Predicated region
        $region29: #{tpu_custom_call.1} parent=27 // pred_check
          %p153 = pneg %p41
        $region30: #{tpu_custom_call.1} parent=27 // pred_check_branch
          %155 = sbr.rel (%p153) target = $region32
        $region31: #{tpu_custom_call.1} parent=27 // pred_region
          %156 = dma.done %s149, 256
        $region32: #{tpu_custom_call.1} parent=27 // pred_fallthru
          _
        // Predicated region
        $region33: #{tpu_custom_call.1} parent=27 // pred_check
          %p157 = pneg %p62
        $region34: #{tpu_custom_call.1} parent=27 // pred_check_branch
          %159 = sbr.rel (%p157) target = $region36
        $region35: #{tpu_custom_call.1} parent=27 // pred_region
          %160 = dma.done [#allocation6], 3200
        $region36: #{tpu_custom_call.1} parent=27 // pred_fallthru
          _
        %s161 = sand.u32 %s28, 1
        %s162 = scalar_lea.sflag [#allocation3], %s161
        %s163 = sand.u32 %s28, 1
        %s164 = smul.addr %s163, 16
        %s165 = scalar_lea.vmem [#allocation2], %s164
        %p166 = pneg %p41
        %p167 = pneg %p38
        %p168 = pneg %p62
        %p169 = pneg %p59
        %p170 = pneg %p88
        %p171 = pneg %p85
        %s172 = sand.u32 %s75, 1
        %s173 = scalar_lea.sflag [#allocation4], %s172
        %s174 = sand.u32 %s75, 1
        %s175 = smul.addr %s174, 32
        %s176 = scalar_lea.vmem [#allocation7], %s175
        %s177 = smul.u32 4, %s20
        %s178 = smul.u32 4, %s20
        %v180 = vld [vmem:[#allocation5] sm:$0xf]
        %v181 = vld [vmem:[#allocation5 + $0x4] sm:$0xf]
        %v182 = vld [vmem:[#allocation5 + $0x8] sm:$0xf]
        %v183 = vld [vmem:[#allocation5 + $0xc] sm:$0xf]
        %v184 = vld [vmem:[#allocation5 + $0x10] sm:$0xf]
        %v185 = vld [vmem:[#allocation5 + $0x14] sm:$0xf]
        %v186 = vld [vmem:[#allocation5 + $0x18] sm:$0xf]
        %v187 = vld [vmem:[#allocation5 + $0x1c] sm:$0xf]
        %v188 = vld [vmem:[#allocation5 + $0x20] sm:$0xf]
        %v189 = vld [vmem:[#allocation5 + $0x24] sm:$0xf]
        %v190 = vld [vmem:[#allocation5 + $0x28] sm:$0xf]
        %v191 = vld [vmem:[#allocation5 + $0x2c] sm:$0xf]
        %v192 = vld [vmem:[#allocation5 + $0x30] sm:$0xf]
        %v193 = vld [vmem:[#allocation5 + $0x34] sm:$0xf]
        %v194 = vld [vmem:[#allocation5 + $0x38] sm:$0xf]
        %v195 = vld [vmem:[#allocation5 + $0x3c] sm:$0xf]
        %v196 = vld [vmem:[%s152] sm:$0xf]
        %v197 = vld [vmem:[%s152 + $0x4] sm:$0xf]
        %v200 = vunpack.c.l.b16 %v196
        %v201 = vunpack.c.l.b16 %v197
        %v202 = vpack.c.b16 %v201, %v200
        %v220 = vunpack.c.l.b16 %v180
        %v221 = vunpack.c.l.b16 %v181
        %v222 = vunpack.c.l.b16 %v182
        %v223 = vunpack.c.l.b16 %v183
        %v224 = vunpack.c.l.b16 %v184
        %v225 = vunpack.c.l.b16 %v185
        %v226 = vunpack.c.l.b16 %v186
        %v227 = vunpack.c.l.b16 %v187
        %v228 = vunpack.c.l.b16 %v188
        %v229 = vunpack.c.l.b16 %v189
        %v230 = vunpack.c.l.b16 %v190
        %v231 = vunpack.c.l.b16 %v191
        %v232 = vunpack.c.l.b16 %v192
        %v233 = vunpack.c.l.b16 %v193
        %v234 = vunpack.c.l.b16 %v194
        %v235 = vunpack.c.l.b16 %v195
        %v236 = vpack.c.b16 %v221, %v220
        %v237 = vpack.c.b16 %v223, %v222
        %v238 = vpack.c.b16 %v225, %v224
        %v239 = vpack.c.b16 %v227, %v226
        %v240 = vpack.c.b16 %v229, %v228
        %v241 = vpack.c.b16 %v231, %v230
        %v242 = vpack.c.b16 %v233, %v232
        %v243 = vpack.c.b16 %v235, %v234
        %252 = vmatprep.subr.bf16.mxu0 0
        %253 = vmatpush1.bf16.msra.mxu0 %v236
        %254 = vmatprep.subr.bf16.mxu0 0
        %255 = vmatpush1.bf16.msra.mxu0 %v237
        %256 = vmatprep.subr.bf16.mxu0 0
        %257 = vmatpush1.bf16.msra.mxu0 %v238
        %258 = vmatprep.subr.bf16.mxu0 0
        %259 = vmatpush1.bf16.msra.mxu0 %v239
        %260 = vmatprep.subr.bf16.mxu0 0
        %261 = vmatpush1.bf16.msra.mxu0 %v240
        %262 = vmatprep.subr.bf16.mxu0 0
        %263 = vmatpush1.bf16.msra.mxu0 %v241
        %264 = vmatprep.subr.bf16.mxu0 0
        %265 = vmatpush1.bf16.msra.mxu0 %v242
        %266 = vmatprep.subr.bf16.mxu0 0
        %267 = vmatpush1.bf16.msra.mxu0 %v243
        %268 = vmatprep.subr.bf16.mxu0 0
        %269 = vmatpush1.bf16.msra.mxu0 0
        %270 = vmatprep.subr.bf16.mxu0 0
        %271 = vmatpush1.bf16.msra.mxu0 0
        %272 = vmatprep.subr.bf16.mxu0 0
        %273 = vmatpush1.bf16.msra.mxu0 0
        %274 = vmatprep.subr.bf16.mxu0 0
        %275 = vmatpush1.bf16.msra.mxu0 0
        %276 = vmatprep.subr.bf16.mxu0 0
        %277 = vmatpush1.bf16.msra.mxu0 0
        %278 = vmatprep.subr.bf16.mxu0 0
        %279 = vmatpush1.bf16.msra.mxu0 0
        %280 = vmatprep.subr.bf16.mxu0 0
        %281 = vmatpush1.bf16.msra.mxu0 0
        %282 = vmatprep.subr.bf16.mxu0 0
        %283 = vmatpush1.bf16.msra.mxu0 0
        %284 = vmatprep.mubr.bf16.mxu0 0
        %285 = vmatmul.mubr.bf16.gmra.mrb[0].mxu0 %v202
        %v286 = vpop.f32.mrb[0].mxu0
        %v287 = vadd.f32 0.0, %v286
        %v288 = vpop.f32.mrb[0].mxu0
        %v289 = vpop.f32.mrb[0].mxu0
        %v290 = vadd.f32 0.0, %v289
        %v291 = vpop.f32.mrb[0].mxu0
        %292 = vdwg.mxu0
        %v293 = vtanh.pop %v287
        %v294 = vtanh.pop %v290
        %v295 = vld [vmem:[%s152 + $0x8] sm:$0xf]
        %v296 = vld [vmem:[%s152 + $0xc] sm:$0xf]
        %v299 = vunpack.c.l.b16 %v295
        %v300 = vunpack.c.l.b16 %v296
        %v301 = vpack.c.b16 %v300, %v299
        %303 = vmatprep.subr.bf16.mxu0 0
        %304 = vmatpush1.bf16.msra.mxu0 %v236
        %305 = vmatprep.subr.bf16.mxu0 0
        %306 = vmatpush1.bf16.msra.mxu0 %v237
        %307 = vmatprep.subr.bf16.mxu0 0
        %308 = vmatpush1.bf16.msra.mxu0 %v238
        %309 = vmatprep.subr.bf16.mxu0 0
        %310 = vmatpush1.bf16.msra.mxu0 %v239
        %311 = vmatprep.subr.bf16.mxu0 0
        %312 = vmatpush1.bf16.msra.mxu0 %v240
        %313 = vmatprep.subr.bf16.mxu0 0
        %314 = vmatpush1.bf16.msra.mxu0 %v241
        %315 = vmatprep.subr.bf16.mxu0 0
        %316 = vmatpush1.bf16.msra.mxu0 %v242
        %317 = vmatprep.subr.bf16.mxu0 0
        %318 = vmatpush1.bf16.msra.mxu0 %v243
        %319 = vmatprep.subr.bf16.mxu0 0
        %320 = vmatpush1.bf16.msra.mxu0 0
        %321 = vmatprep.subr.bf16.mxu0 0
        %322 = vmatpush1.bf16.msra.mxu0 0
        %323 = vmatprep.subr.bf16.mxu0 0
        %324 = vmatpush1.bf16.msra.mxu0 0
        %325 = vmatprep.subr.bf16.mxu0 0
        %326 = vmatpush1.bf16.msra.mxu0 0
        %327 = vmatprep.subr.bf16.mxu0 0
        %328 = vmatpush1.bf16.msra.mxu0 0
        %329 = vmatprep.subr.bf16.mxu0 0
        %330 = vmatpush1.bf16.msra.mxu0 0
        %331 = vmatprep.subr.bf16.mxu0 0
        %332 = vmatpush1.bf16.msra.mxu0 0
        %333 = vmatprep.subr.bf16.mxu0 0
        %334 = vmatpush1.bf16.msra.mxu0 0
        %335 = vmatprep.mubr.bf16.mxu0 0
        %336 = vmatmul.mubr.bf16.gmra.mrb[0].mxu0 %v301
        %v337 = vpop.f32.mrb[0].mxu0
        %v338 = vadd.f32 0.0, %v337
        %v339 = vpop.f32.mrb[0].mxu0
        %v340 = vpop.f32.mrb[0].mxu0
        %v341 = vadd.f32 0.0, %v340
        %v342 = vpop.f32.mrb[0].mxu0
        %343 = vdwg.mxu0
        %v344 = vtanh.pop %v338
        %v345 = vtanh.pop %v341
        %v346 = vld [vmem:[#allocation5 + $0x40] sm:$0xf]
        %v347 = vld [vmem:[#allocation5 + $0x44] sm:$0xf]
        %v348 = vld [vmem:[#allocation5 + $0x48] sm:$0xf]
        %v349 = vld [vmem:[#allocation5 + $0x4c] sm:$0xf]
        %v350 = vld [vmem:[#allocation5 + $0x50] sm:$0xf]
        %v351 = vld [vmem:[#allocation5 + $0x54] sm:$0xf]
        %v352 = vld [vmem:[#allocation5 + $0x58] sm:$0xf]
        %v353 = vld [vmem:[#allocation5 + $0x5c] sm:$0xf]
        %v354 = vld [vmem:[#allocation5 + $0x60] sm:$0xf]
        %v355 = vld [vmem:[#allocation5 + $0x64] sm:$0xf]
        %v356 = vld [vmem:[#allocation5 + $0x68] sm:$0xf]
        %v357 = vld [vmem:[#allocation5 + $0x6c] sm:$0xf]
        %v358 = vld [vmem:[#allocation5 + $0x70] sm:$0xf]
        %v359 = vld [vmem:[#allocation5 + $0x74] sm:$0xf]
        %v360 = vld [vmem:[#allocation5 + $0x78] sm:$0xf]
        %v361 = vld [vmem:[#allocation5 + $0x7c] sm:$0xf]
        %v362 = vld [vmem:[#allocation5 + $0x80] sm:$0x1]
        %v363 = vunpack.c.l.bf16 %v362
        %v364 = vpack.c.bf16 %v294, %v293
        %v365 = vlaneseq
        %v366 = vshrl.u32 %v365, 7
        %v367 = vsub.s32 0, %v366
        %v368 = vrot.slane %v363, %v367
        %v385 = vunpack.c.l.b16 %v346
        %v386 = vunpack.c.l.b16 %v347
        %v387 = vunpack.c.l.b16 %v348
        %v388 = vunpack.c.l.b16 %v349
        %v389 = vunpack.c.l.b16 %v350
        %v390 = vunpack.c.l.b16 %v351
        %v391 = vunpack.c.l.b16 %v352
        %v392 = vunpack.c.l.b16 %v353
        %v393 = vunpack.c.l.b16 %v354
        %v394 = vunpack.c.l.b16 %v355
        %v395 = vunpack.c.l.b16 %v356
        %v396 = vunpack.c.l.b16 %v357
        %v397 = vunpack.c.l.b16 %v358
        %v398 = vunpack.c.l.b16 %v359
        %v399 = vunpack.c.l.b16 %v360
        %v400 = vunpack.c.l.b16 %v361
        %v401 = vpack.c.b16 %v386, %v385
        %v402 = vpack.c.b16 %v388, %v387
        %v403 = vpack.c.b16 %v390, %v389
        %v404 = vpack.c.b16 %v392, %v391
        %v405 = vpack.c.b16 %v394, %v393
        %v406 = vpack.c.b16 %v396, %v395
        %v407 = vpack.c.b16 %v398, %v397
        %v408 = vpack.c.b16 %v400, %v399
        %417 = vmatprep.subr.bf16.mxu0 0
        %418 = vmatpush1.bf16.msra.mxu0 %v401
        %419 = vmatprep.subr.bf16.mxu0 0
        %420 = vmatpush1.bf16.msra.mxu0 %v402
        %421 = vmatprep.subr.bf16.mxu0 0
        %422 = vmatpush1.bf16.msra.mxu0 %v403
        %423 = vmatprep.subr.bf16.mxu0 0
        %424 = vmatpush1.bf16.msra.mxu0 %v404
        %425 = vmatprep.subr.bf16.mxu0 0
        %426 = vmatpush1.bf16.msra.mxu0 %v405
        %427 = vmatprep.subr.bf16.mxu0 0
        %428 = vmatpush1.bf16.msra.mxu0 %v406
        %429 = vmatprep.subr.bf16.mxu0 0
        %430 = vmatpush1.bf16.msra.mxu0 %v407
        %431 = vmatprep.subr.bf16.mxu0 0
        %432 = vmatpush1.bf16.msra.mxu0 %v408
        %433 = vmatprep.subr.bf16.mxu0 0
        %434 = vmatpush1.bf16.msra.mxu0 0
        %435 = vmatprep.subr.bf16.mxu0 0
        %436 = vmatpush1.bf16.msra.mxu0 0
        %437 = vmatprep.subr.bf16.mxu0 0
        %438 = vmatpush1.bf16.msra.mxu0 0
        %439 = vmatprep.subr.bf16.mxu0 0
        %440 = vmatpush1.bf16.msra.mxu0 0
        %441 = vmatprep.subr.bf16.mxu0 0
        %442 = vmatpush1.bf16.msra.mxu0 0
        %443 = vmatprep.subr.bf16.mxu0 0
        %444 = vmatpush1.bf16.msra.mxu0 0
        %445 = vmatprep.subr.bf16.mxu0 0
        %446 = vmatpush1.bf16.msra.mxu0 0
        %447 = vmatprep.subr.bf16.mxu0 0
        %448 = vmatpush1.bf16.msra.mxu0 0
        %449 = vmatprep.mubr.bf16.mxu0 0
        %450 = vmatmul.mubr.bf16.gmra.mrb[0].mxu0 %v364
        %v451 = vpop.f32.mrb[0].mxu0
        %v452 = vadd.f32 %v368, %v451
        %v453 = vpop.f32.mrb[0].mxu0
        %v454 = vpop.f32.mrb[0].mxu0
        %v455 = vadd.f32 %v368, %v454
        %v456 = vpop.f32.mrb[0].mxu0
        %457 = vdwg.mxu0
        %v458 = vtanh.pop %v452
        %v459 = vtanh.pop %v455
        %v460 = vpack.c.bf16 %v345, %v344
        %461 = vmatprep.subr.bf16.mxu0 0
        %462 = vmatpush1.bf16.msra.mxu0 %v401
        %463 = vmatprep.subr.bf16.mxu0 0
        %464 = vmatpush1.bf16.msra.mxu0 %v402
        %465 = vmatprep.subr.bf16.mxu0 0
        %466 = vmatpush1.bf16.msra.mxu0 %v403
        %467 = vmatprep.subr.bf16.mxu0 0
        %468 = vmatpush1.bf16.msra.mxu0 %v404
        %469 = vmatprep.subr.bf16.mxu0 0
        %470 = vmatpush1.bf16.msra.mxu0 %v405
        %471 = vmatprep.subr.bf16.mxu0 0
        %472 = vmatpush1.bf16.msra.mxu0 %v406
        %473 = vmatprep.subr.bf16.mxu0 0
        %474 = vmatpush1.bf16.msra.mxu0 %v407
        %475 = vmatprep.subr.bf16.mxu0 0
        %476 = vmatpush1.bf16.msra.mxu0 %v408
        %477 = vmatprep.subr.bf16.mxu0 0
        %478 = vmatpush1.bf16.msra.mxu0 0
        %479 = vmatprep.subr.bf16.mxu0 0
        %480 = vmatpush1.bf16.msra.mxu0 0
        %481 = vmatprep.subr.bf16.mxu0 0
        %482 = vmatpush1.bf16.msra.mxu0 0
        %483 = vmatprep.subr.bf16.mxu0 0
        %484 = vmatpush1.bf16.msra.mxu0 0
        %485 = vmatprep.subr.bf16.mxu0 0
        %486 = vmatpush1.bf16.msra.mxu0 0
        %487 = vmatprep.subr.bf16.mxu0 0
        %488 = vmatpush1.bf16.msra.mxu0 0
        %489 = vmatprep.subr.bf16.mxu0 0
        %490 = vmatpush1.bf16.msra.mxu0 0
        %491 = vmatprep.subr.bf16.mxu0 0
        %492 = vmatpush1.bf16.msra.mxu0 0
        %493 = vmatprep.mubr.bf16.mxu0 0
        %494 = vmatmul.mubr.bf16.gmra.mrb[0].mxu0 %v460
        %v495 = vpop.f32.mrb[0].mxu0
        %v496 = vadd.f32 %v368, %v495
        %v497 = vpop.f32.mrb[0].mxu0
        %v498 = vpop.f32.mrb[0].mxu0
        %v499 = vadd.f32 %v368, %v498
        %v500 = vpop.f32.mrb[0].mxu0
        %501 = vdwg.mxu0
        %v502 = vtanh.pop %v496
        %v503 = vtanh.pop %v499
        %v504 = vld [vmem:[#allocation5 + $0x84] sm:$0xf]
        %v505 = vld [vmem:[#allocation5 + $0x88] sm:$0xf]
        %v506 = vld [vmem:[#allocation5 + $0x8c] sm:$0xf]
        %v507 = vld [vmem:[#allocation5 + $0x90] sm:$0xf]
        %v508 = vld [vmem:[#allocation5 + $0x94] sm:$0xf]
        %v509 = vld [vmem:[#allocation5 + $0x98] sm:$0xf]
        %v510 = vld [vmem:[#allocation5 + $0x9c] sm:$0xf]
        %v511 = vld [vmem:[#allocation5 + $0xa0] sm:$0xf]
        %v512 = vld [vmem:[#allocation5 + $0xa4] sm:$0xf]
        %v513 = vld [vmem:[#allocation5 + $0xa8] sm:$0xf]
        %v514 = vld [vmem:[#allocation5 + $0xac] sm:$0xf]
        %v515 = vld [vmem:[#allocation5 + $0xb0] sm:$0xf]
        %v516 = vld [vmem:[#allocation5 + $0xb4] sm:$0xf]
        %v517 = vld [vmem:[#allocation5 + $0xb8] sm:$0xf]
        %v518 = vld [vmem:[#allocation5 + $0xbc] sm:$0xf]
        %v519 = vld [vmem:[#allocation5 + $0xc0] sm:$0xf]
        %v520 = vld [vmem:[#allocation5 + $0xc4] sm:$0x1]
        %v521 = vunpack.c.l.bf16 %v520
        %v522 = vpack.c.bf16 %v459, %v458
        %v523 = vlaneseq
        %v524 = vshrl.u32 %v523, 7
        %v525 = vsub.s32 0, %v524
        %v526 = vrot.slane %v521, %v525
        %v543 = vunpack.c.l.b16 %v504
        %v544 = vunpack.c.l.b16 %v505
        %v545 = vunpack.c.l.b16 %v506
        %v546 = vunpack.c.l.b16 %v507
        %v547 = vunpack.c.l.b16 %v508
        %v548 = vunpack.c.l.b16 %v509
        %v549 = vunpack.c.l.b16 %v510
        %v550 = vunpack.c.l.b16 %v511
        %v551 = vunpack.c.l.b16 %v512
        %v552 = vunpack.c.l.b16 %v513
        %v553 = vunpack.c.l.b16 %v514
        %v554 = vunpack.c.l.b16 %v515
        %v555 = vunpack.c.l.b16 %v516
        %v556 = vunpack.c.l.b16 %v517
        %v557 = vunpack.c.l.b16 %v518
        %v558 = vunpack.c.l.b16 %v519
        %v559 = vpack.c.b16 %v544, %v543
        %v560 = vpack.c.b16 %v546, %v545
        %v561 = vpack.c.b16 %v548, %v547
        %v562 = vpack.c.b16 %v550, %v549
        %v563 = vpack.c.b16 %v552, %v551
        %v564 = vpack.c.b16 %v554, %v553
        %v565 = vpack.c.b16 %v556, %v555
        %v566 = vpack.c.b16 %v558, %v557
        %575 = vmatprep.subr.bf16.mxu0 0
        %576 = vmatpush1.bf16.msra.mxu0 %v559
        %577 = vmatprep.subr.bf16.mxu0 0
        %578 = vmatpush1.bf16.msra.mxu0 %v560
        %579 = vmatprep.subr.bf16.mxu0 0
        %580 = vmatpush1.bf16.msra.mxu0 %v561
        %581 = vmatprep.subr.bf16.mxu0 0
        %582 = vmatpush1.bf16.msra.mxu0 %v562
        %583 = vmatprep.subr.bf16.mxu0 0
        %584 = vmatpush1.bf16.msra.mxu0 %v563
        %585 = vmatprep.subr.bf16.mxu0 0
        %586 = vmatpush1.bf16.msra.mxu0 %v564
        %587 = vmatprep.subr.bf16.mxu0 0
        %588 = vmatpush1.bf16.msra.mxu0 %v565
        %589 = vmatprep.subr.bf16.mxu0 0
        %590 = vmatpush1.bf16.msra.mxu0 %v566
        %591 = vmatprep.subr.bf16.mxu0 0
        %592 = vmatpush1.bf16.msra.mxu0 0
        %593 = vmatprep.subr.bf16.mxu0 0
        %594 = vmatpush1.bf16.msra.mxu0 0
        %595 = vmatprep.subr.bf16.mxu0 0
        %596 = vmatpush1.bf16.msra.mxu0 0
        %597 = vmatprep.subr.bf16.mxu0 0
        %598 = vmatpush1.bf16.msra.mxu0 0
        %599 = vmatprep.subr.bf16.mxu0 0
        %600 = vmatpush1.bf16.msra.mxu0 0
        %601 = vmatprep.subr.bf16.mxu0 0
        %602 = vmatpush1.bf16.msra.mxu0 0
        %603 = vmatprep.subr.bf16.mxu0 0
        %604 = vmatpush1.bf16.msra.mxu0 0
        %605 = vmatprep.subr.bf16.mxu0 0
        %606 = vmatpush1.bf16.msra.mxu0 0
        %607 = vmatprep.mubr.bf16.mxu0 0
        %608 = vmatmul.mubr.bf16.gmra.mrb[0].mxu0 %v522
        %v609 = vpop.f32.mrb[0].mxu0
        %v610 = vadd.f32 %v526, %v609
        %v611 = vpop.f32.mrb[0].mxu0
        %v612 = vpop.f32.mrb[0].mxu0
        %v613 = vadd.f32 %v526, %v612
        %v614 = vpop.f32.mrb[0].mxu0
        %615 = vdwg.mxu0
        %616 = vst [vmem:[%s176] sm:$0xff] %v610
        %617 = vst [vmem:[%s176 + $0x8] sm:$0xff] %v613
        %v618 = vpack.c.bf16 %v503, %v502
        %619 = vmatprep.subr.bf16.mxu0 0
        %620 = vmatpush1.bf16.msra.mxu0 %v559
        %621 = vmatprep.subr.bf16.mxu0 0
        %622 = vmatpush1.bf16.msra.mxu0 %v560
        %623 = vmatprep.subr.bf16.mxu0 0
        %624 = vmatpush1.bf16.msra.mxu0 %v561
        %625 = vmatprep.subr.bf16.mxu0 0
        %626 = vmatpush1.bf16.msra.mxu0 %v562
        %627 = vmatprep.subr.bf16.mxu0 0
        %628 = vmatpush1.bf16.msra.mxu0 %v563
        %629 = vmatprep.subr.bf16.mxu0 0
        %630 = vmatpush1.bf16.msra.mxu0 %v564
        %631 = vmatprep.subr.bf16.mxu0 0
        %632 = vmatpush1.bf16.msra.mxu0 %v565
        %633 = vmatprep.subr.bf16.mxu0 0
        %634 = vmatpush1.bf16.msra.mxu0 %v566
        %635 = vmatprep.subr.bf16.mxu0 0
        %636 = vmatpush1.bf16.msra.mxu0 0
        %637 = vmatprep.subr.bf16.mxu0 0
        %638 = vmatpush1.bf16.msra.mxu0 0
        %639 = vmatprep.subr.bf16.mxu0 0
        %640 = vmatpush1.bf16.msra.mxu0 0
        %641 = vmatprep.subr.bf16.mxu0 0
        %642 = vmatpush1.bf16.msra.mxu0 0
        %643 = vmatprep.subr.bf16.mxu0 0
        %644 = vmatpush1.bf16.msra.mxu0 0
        %645 = vmatprep.subr.bf16.mxu0 0
        %646 = vmatpush1.bf16.msra.mxu0 0
        %647 = vmatprep.subr.bf16.mxu0 0
        %648 = vmatpush1.bf16.msra.mxu0 0
        %649 = vmatprep.subr.bf16.mxu0 0
        %650 = vmatpush1.bf16.msra.mxu0 0
        %651 = vmatprep.mubr.bf16.mxu0 0
        %652 = vmatmul.mubr.bf16.gmra.mrb[0].mxu0 %v618
        %v653 = vpop.f32.mrb[0].mxu0
        %v654 = vadd.f32 %v526, %v653
        %v655 = vpop.f32.mrb[0].mxu0
        %v656 = vpop.f32.mrb[0].mxu0
        %v657 = vadd.f32 %v526, %v656
        %v658 = vpop.f32.mrb[0].mxu0
        %659 = vdwg.mxu0
        %660 = vst [vmem:[%s176 + $0x10] sm:$0xff] %v654
        %661 = vst [vmem:[%s176 + $0x18] sm:$0xff] %v657
        %s662 = sand.u32 %s75, 1
        %s663 = scalar_lea.sflag [#allocation4], %s662
        %s664 = sand.u32 %s75, 1
        %s665 = smul.addr %s664, 32
        %s666 = scalar_lea.vmem [#allocation7], %s665
        // Predicated region
        $region37: #{tpu_custom_call.1} parent=27 // pred_check
          %p667 = pneg %p85
        $region38: #{tpu_custom_call.1} parent=27 // pred_check_branch
          %669 = sbr.rel (%p667) target = $region40
        $region39: #{tpu_custom_call.1} parent=27 // pred_region
          %s670 = smul.u32 4, %s20
          %s672 = ssub.s32 512, 512
          %673 = vsyncadd %s663, %s672
          %s674 = smul.addr %s670, 128
          %s675 = scalar_lea.hbm %s2, %s674
          %s676 = sshll.u32 %s666, 4
          %s677 = int_to_ptr.vmem [resolvable:$true] %s676
          %682 = dma.vmem_to_hbm [thread:$0]  %s677, 512, %s675, %s663, 128, 128, 8
        $region40: #{tpu_custom_call.1} parent=27 // pred_fallthru
          _
      $region28: #{tpu_custom_call.1} parent=5 // pred_fallthru
        _
      %p683 = scmp.le.s32.totalorder 2, %s15
      // Predicated region
      $region41: #{tpu_custom_call.1} parent=5 // pred_check
        %p684 = pneg %p683
      $region42: #{tpu_custom_call.1} parent=5 // pred_check_branch
        %686 = sbr.rel (%p684) target = $region44
      $region43: #{tpu_custom_call.1} parent=5 // pred_region
        %s687 = ssub.s32 %s15, 2
        // Predicated region
        $region45: #{tpu_custom_call.1} parent=43 // pred_check
          %p688 = pneg %p91
        $region46: #{tpu_custom_call.1} parent=43 // pred_check_branch
          %690 = sbr.rel (%p688) target = $region48
        $region47: #{tpu_custom_call.1} parent=43 // pred_region
          %s691 = sand.u32 %s76, 1
          %s692 = scalar_lea.sflag [#allocation4], %s691
          %s693 = sand.u32 %s76, 1
          %s694 = smul.addr %s693, 32
          %s695 = scalar_lea.vmem [#allocation7], %s694
          %696 = dma.done %s692, 512
        $region48: #{tpu_custom_call.1} parent=43 // pred_fallthru
          _
      $region44: #{tpu_custom_call.1} parent=5 // pred_fallthru
        _
    $region6: #{tpu_custom_call.1} parent=1 // loop_footer
      %s19 = sadd.s32 1, %s15
    $region7: #{tpu_custom_call.1} parent=1 // loop_footer_branch
      %14 = sbr.rel target = $region3
    $region8: #{tpu_custom_call.1} parent=1 // loop_exit
      _
    %697 = vsyncpa [#allocation3], 1
    %s698 = scalar_lea.sflag [#allocation3], 1
    %699 = vsyncpa %s698, 1
    %700 = vsyncpa [#allocation6], 1
    %701 = vsyncpa [#allocation4], 1
    %s702 = scalar_lea.sflag [#allocation4], 1
    %703 = vsyncpa %s702, 1

</llo_original>
